<compile_context>
chip_gen: v5e
topology: v5e:2x2
jax: 0.10.0
libtpu: 0.0.40
codegen_flags: <defaults>
</compile_context>

<pallas_src>
import jax
import jax.numpy as jnp
from jax.experimental import pallas as pl
from jax.experimental.pallas import tpu as pltpu

# ------------------------- small, module-consistent sizes -------------------
B = 2           # batch
S = 8           # max_seqlen
T = S + 1       # seq + appended feat token
D = 32          # model_dimension (dim_feedforward == model_dimension in spec)
H = 4           # num_heads
DH = D // H     # head dim
L = 2           # num_layers
VOCAB = 100     # vocab_size
NV = 10         # vector-param rows per layer (bq,bk,bv,bo,g1,be1,b1,b2,g2,be2)
EPS = 1e-5      # LayerNorm eps (PyTorch default)


# ------------------------------ in-kernel helpers ---------------------------
def _gelu(x):
    # TODO(synk): PyTorch TransformerEncoderLayer('gelu') is exact erf-GELU; using the
    # tanh approximation since erf lowering on Mosaic is not guaranteed.
    c = 0.7978845608028654  # sqrt(2/pi)
    return 0.5 * x * (1.0 + jnp.tanh(c * (x + 0.044715 * x * x * x)))


def _layernorm(x, gamma, beta):
    mu = jnp.mean(x, axis=-1, keepdims=True)
    xc = x - mu
    var = jnp.mean(xc * xc, axis=-1, keepdims=True)
    return xc * jax.lax.rsqrt(var + EPS) * gamma + beta


def _head_id(idx, group):
    """head index of position `idx` when positions are grouped in blocks of `group`."""
    hid = jnp.zeros_like(idx)
    for h in range(1, H):
        hid = hid + (idx >= h * group).astype(jnp.int32)
    return hid


# --------------------- fully fused TextEncoder forward kernel ---------------
def encoder_kernel(ids_ref, emb_ref, proj_w_ref, prep_v_ref, pos_ref,
                   layer_w_ref, layer_v_ref, head_w_ref, head_v_ref, o_ref):
    f32 = jnp.float32

    # ---- token embedding as a one-hot matmul (vectorized gather) -----------
    ids = ids_ref[...]                                                  # (S, 1) int32
    vocab_iota = jax.lax.broadcasted_iota(jnp.int32, (S, VOCAB), 1)
    onehot = (ids == vocab_iota).astype(f32)                            # (S, VOCAB)
    emb = jnp.dot(onehot, emb_ref[...], preferred_element_type=f32)     # (S, D)

    # ---- proj + append feat token + positional embedding -------------------
    proj_b = prep_v_ref[0:1, :]
    feat = prep_v_ref[1:2, :]
    y = jnp.dot(emb, proj_w_ref[...], preferred_element_type=f32) + proj_b
    x = jnp.concatenate([y, feat], axis=0) + pos_ref[...]               # (T, D)

    # ---- hoisted head-batching masks (same for every layer) ----------------
    # head_mask[(h*T + i), d] = 1 iff model-dim column d belongs to head h.
    row_i = jax.lax.broadcasted_iota(jnp.int32, (H * T, D), 0)
    col_i = jax.lax.broadcasted_iota(jnp.int32, (H * T, D), 1)
    head_mask = (_head_id(row_i, T) == _head_id(col_i, DH)).astype(f32)  # (H*T, D)

    # expand[(h*T + i), j] = 1 iff j == i   (replicates (T,D) rows H times)
    er = jax.lax.broadcasted_iota(jnp.int32, (H * T, T), 0)
    ec = jax.lax.broadcasted_iota(jnp.int32, (H * T, T), 1)
    expand = jnp.zeros((H * T, T), f32)
    for h in range(H):
        expand = expand + (er == ec + h * T).astype(f32)
    # collapse[i, (h*T + j)] = 1 iff j == i  (sums the H head blocks back to (T,D))
    cr = jax.lax.broadcasted_iota(jnp.int32, (T, H * T), 0)
    cc = jax.lax.broadcasted_iota(jnp.int32, (T, H * T), 1)
    collapse = jnp.zeros((T, H * T), f32)
    for h in range(H):
        collapse = collapse + (cc == cr + h * T).astype(f32)

    scale = 1.0 / (DH ** 0.5)

    # ---- L post-norm transformer encoder layers (static unroll) ------------
    for l in range(L):
        w = layer_w_ref[l]                                              # (D, 6D)
        vb = layer_v_ref[l]                                             # (NV, D)

        # fused QKV projection
        qkv = jnp.dot(x, w[:, 0:3 * D], preferred_element_type=f32)     # (T, 3D)
        q = (qkv[:, 0:D] + vb[0:1, :]) * scale
        k = qkv[:, D:2 * D] + vb[1:2, :]
        v = qkv[:, 2 * D:3 * D] + vb[2:3, :]

        # all heads' scores as one (H*T, T) slab; softmax is row-wise per head
        q_big = jnp.dot(expand, q, preferred_element_type=f32) * head_mask   # (H*T, D)
        s = jax.lax.dot_general(q_big, k, (((1,), (1,)), ((), ())),
                                preferred_element_type=f32)             # (H*T, T)
        s = s - jnp.max(s, axis=-1, keepdims=True)
        p = jnp.exp(s)
        denom = jnp.sum(p, axis=-1, keepdims=True)
        inv = pl.reciprocal(denom, approx=True)
        inv = inv * (2.0 - denom * inv)          # one Newton step -> near exact
        p = p * inv

        o_big = jnp.dot(p, v, preferred_element_type=f32) * head_mask   # (H*T, D)
        attn = jnp.dot(collapse, o_big, preferred_element_type=f32)     # (T, D)
        attn = jnp.dot(attn, w[:, 3 * D:4 * D],
                       preferred_element_type=f32) + vb[3:4, :]

        x = _layernorm(x + attn, vb[4:5, :], vb[5:6, :])                # norm1

        h1 = _gelu(jnp.dot(x, w[:, 4 * D:5 * D],
                           preferred_element_type=f32) + vb[6:7, :])
        ff = jnp.dot(h1, w[:, 5 * D:6 * D],
                     preferred_element_type=f32) + vb[7:8, :]
        x = _layernorm(x + ff, vb[8:9, :], vb[9:10, :])                 # norm2

    # ---- pool='token' (feat token is last) + fc = LayerNorm + Linear -------
    pooled = x[S:S + 1, :]                                              # (1, D)
    pooled = _layernorm(pooled, head_v_ref[0:1, :], head_v_ref[1:2, :])
    out = jnp.dot(pooled, head_w_ref[...],
                  preferred_element_type=f32) + head_v_ref[2:3, :]      # (1, D)
    o_ref[...] = out[None]                                              # (1, 1, D)


# ------------------------------- wrapper -------------------------------------
def text_encoder_forward(token_ids, p):
    ids2d = token_ids.reshape(B * S, 1).astype(jnp.int32)
    out = pl.pallas_call(
        encoder_kernel,
        out_shape=jax.ShapeDtypeStruct((B, 1, D), jnp.float32),
        grid=(B,),
        in_specs=[
            pl.BlockSpec((S, 1), lambda b: (b, 0)),                 # token ids (per batch)
            pl.BlockSpec((VOCAB, D), lambda b: (0, 0)),             # embedding table
            pl.BlockSpec((D, D), lambda b: (0, 0)),                 # proj weight
            pl.BlockSpec((2, D), lambda b: (0, 0)),                 # [proj_b; feat_token]
            pl.BlockSpec((T, D), lambda b: (0, 0)),                 # pos embedding
            pl.BlockSpec((L, D, 6 * D), lambda b: (0, 0, 0)),       # layer weight slab
            pl.BlockSpec((L, NV, D), lambda b: (0, 0, 0)),          # layer vector slab
            pl.BlockSpec((D, D), lambda b: (0, 0)),                 # fc weight
            pl.BlockSpec((3, D), lambda b: (0, 0)),                 # [fc_ln_g; fc_ln_b; fc_bias]
        ],
        out_specs=pl.BlockSpec((1, 1, D), lambda b: (b, 0, 0)),
        compiler_params=pltpu.CompilerParams(
            dimension_semantics=("parallel",)),     # v7x: one batch element per TC
    )(ids2d, p["embedding"], p["proj_w"], p["prep_v"], p["pos"],
      p["layer_w"], p["layer_v"], p["fc_w"], p["head_v"])
    return out.reshape(B, D)


# ----------------------------- deterministic params --------------------------
def init_params(key):
    scale = D ** -0.5
    ks = iter(jax.random.split(key, 64))

    def nrm(shape, s=scale):
        return (s * jax.random.normal(next(ks), shape)).astype(jnp.float32)

    p = {}
    p["embedding"] = nrm((VOCAB, D), 1.0)
    p["prep_v"] = jnp.concatenate([nrm((1, D)),        # proj bias
                                   nrm((1, D))],       # feat token
                                  axis=0)              # (2, D)
    p["pos"] = (scale * jax.random.uniform(next(ks), (T, D))).astype(jnp.float32)
    p["proj_w"] = nrm((D, D))

    layer_w, layer_v = [], []
    for _ in range(L):
        wq, wk, wv, wo, w1, w2 = (nrm((D, D)) for _ in range(6))
        layer_w.append(jnp.concatenate([wq, wk, wv, wo, w1, w2], axis=1))   # (D, 6D)
        vecs = [
            nrm((1, D)), nrm((1, D)), nrm((1, D)),                          # bq, bk, bv
            nrm((1, D)),                                                    # bo
            jnp.ones((1, D), jnp.float32), jnp.zeros((1, D), jnp.float32),  # norm1 g, b
            nrm((1, D)), nrm((1, D)),                                       # b1, b2
            jnp.ones((1, D), jnp.float32), jnp.zeros((1, D), jnp.float32),  # norm2 g, b
        ]
        layer_v.append(jnp.concatenate(vecs, axis=0))                       # (NV, D)
    p["layer_w"] = jnp.stack(layer_w, axis=0)                               # (L, D, 6D)
    p["layer_v"] = jnp.stack(layer_v, axis=0)                               # (L, NV, D)

    p["fc_w"] = nrm((D, D))
    p["head_v"] = jnp.concatenate([jnp.ones((1, D), jnp.float32),           # fc LN gamma
                                   jnp.zeros((1, D), jnp.float32),          # fc LN beta
                                   nrm((1, D))], axis=0)                    # fc bias
    return p


if __name__ == "__main__":
    key = jax.random.PRNGKey(0)
    pkey, dkey = jax.random.split(key)
    params = init_params(pkey)
    token_ids = jax.random.randint(dkey, (B, S), 0, VOCAB, dtype=jnp.int32)

    out = text_encoder_forward(token_ids, params)
    out = jax.block_until_ready(out)
    assert out.shape == (B, D) and out.dtype == jnp.float32
    print("KERNEL_OK")
</pallas_src>

<mosaic_0001>
module attributes {stable_mosaic.version = 11 : i64} {
  func.func @encoder_kernel(%arg0: i32, %arg1: memref<8x1xi32, #tpu.memory_space<vmem>>, %arg2: memref<100x32xf32, #tpu.memory_space<vmem>>, %arg3: memref<32x32xf32, #tpu.memory_space<vmem>>, %arg4: memref<2x32xf32, #tpu.memory_space<vmem>>, %arg5: memref<9x32xf32, #tpu.memory_space<vmem>>, %arg6: memref<2x32x192xf32, #tpu.memory_space<vmem>>, %arg7: memref<2x10x32xf32, #tpu.memory_space<vmem>>, %arg8: memref<32x32xf32, #tpu.memory_space<vmem>>, %arg9: memref<3x32xf32, #tpu.memory_space<vmem>>, %arg10: memref<1x1x32xf32, #tpu.memory_space<vmem>>) attributes {dimension_semantics = [#tpu.dimension_semantics<parallel>], iteration_bounds = array<i64: 2>, scalar_prefetch = 0 : i64, scratch_operands = 0 : i64, tpu.core_type = #tpu.core_type<tc>, window_params = [{transform_indices = @transform_0, window_bounds = array<i64: 8, 1>}, {pipeline_mode = #tpu.pipeline_mode<synchronous>, transform_indices = @transform_1, window_bounds = array<i64: 100, 32>}, {pipeline_mode = #tpu.pipeline_mode<synchronous>, transform_indices = @transform_2, window_bounds = array<i64: 32, 32>}, {pipeline_mode = #tpu.pipeline_mode<synchronous>, transform_indices = @transform_3, window_bounds = array<i64: 2, 32>}, {pipeline_mode = #tpu.pipeline_mode<synchronous>, transform_indices = @transform_4, window_bounds = array<i64: 9, 32>}, {pipeline_mode = #tpu.pipeline_mode<synchronous>, transform_indices = @transform_5, window_bounds = array<i64: 2, 32, 192>}, {pipeline_mode = #tpu.pipeline_mode<synchronous>, transform_indices = @transform_6, window_bounds = array<i64: 2, 10, 32>}, {pipeline_mode = #tpu.pipeline_mode<synchronous>, transform_indices = @transform_7, window_bounds = array<i64: 32, 32>}, {pipeline_mode = #tpu.pipeline_mode<synchronous>, transform_indices = @transform_8, window_bounds = array<i64: 3, 32>}, {transform_indices = @transform_9, window_bounds = array<i64: 1, 1, 32>}]} {
    %c0 = arith.constant 0 : index
    %c0_0 = arith.constant 0 : index
    %0 = vector.load %arg1[%c0, %c0_0] : memref<8x1xi32, #tpu.memory_space<vmem>>, vector<8x1xi32>
    %1 = tpu.iota {dimensions = array<i32: 1>} : vector<8x100xi32>
    %2 = vector.broadcast %0 : vector<8x1xi32> to vector<8x100xi32>
    %3 = arith.cmpi eq, %2, %1 : vector<8x100xi32>
    %4 = arith.extui %3 : vector<8x100xi1> to vector<8x100xi32>
    %5 = arith.sitofp %4 : vector<8x100xi32> to vector<8x100xf32>
    %c0_1 = arith.constant 0 : index
    %c0_2 = arith.constant 0 : index
    %6 = vector.load %arg2[%c0_1, %c0_2] : memref<100x32xf32, #tpu.memory_space<vmem>>, vector<100x32xf32>
    %cst = arith.constant dense<0.000000e+00> : vector<8x32xf32>
    %7 = tpu.matmul %5, %6, %cst {dimension_numbers = #tpu.dot_dimension_numbers<[1], [0], [0], [1], [0, 0, 1, 1], [], []>} : vector<8x100xf32>, vector<100x32xf32>, vector<8x32xf32> -> vector<8x32xf32>
    %c0_3 = arith.constant 0 : index
    %c0_4 = arith.constant 0 : index
    %8 = vector.load %arg4[%c0_3, %c0_4] : memref<2x32xf32, #tpu.memory_space<vmem>>, vector<1x32xf32>
    %c1 = arith.constant 1 : index
    %c0_5 = arith.constant 0 : index
    %9 = vector.load %arg4[%c1, %c0_5] : memref<2x32xf32, #tpu.memory_space<vmem>>, vector<1x32xf32>
    %c0_6 = arith.constant 0 : index
    %c0_7 = arith.constant 0 : index
    %10 = vector.load %arg3[%c0_6, %c0_7] : memref<32x32xf32, #tpu.memory_space<vmem>>, vector<32x32xf32>
    %cst_8 = arith.constant dense<0.000000e+00> : vector<8x32xf32>
    %11 = tpu.matmul %7, %10, %cst_8 {dimension_numbers = #tpu.dot_dimension_numbers<[1], [0], [0], [1], [0, 0, 1, 1], [], []>} : vector<8x32xf32>, vector<32x32xf32>, vector<8x32xf32> -> vector<8x32xf32>
    %12 = vector.broadcast %8 : vector<1x32xf32> to vector<8x32xf32>
    %13 = arith.addf %11, %12 : vector<8x32xf32>
    %14 = tpu.concatenate %13, %9 in 0 : vector<8x32xf32>, vector<1x32xf32> -> vector<9x32xf32>
    %c0_9 = arith.constant 0 : index
    %c0_10 = arith.constant 0 : index
    %15 = vector.load %arg5[%c0_9, %c0_10] : memref<9x32xf32, #tpu.memory_space<vmem>>, vector<9x32xf32>
    %16 = arith.addf %14, %15 : vector<9x32xf32>
    %17 = tpu.iota {dimensions = array<i32: 0>} : vector<36x32xi32>
    %18 = tpu.iota {dimensions = array<i32: 1>} : vector<36x32xi32>
    %c0_i32 = arith.constant 0 : i32
    %19 = vector.broadcast %c0_i32 : i32 to vector<36x32xi32>
    %c9_i32 = arith.constant 9 : i32
    %20 = vector.broadcast %c9_i32 : i32 to vector<36x32xi32>
    %21 = arith.cmpi sge, %17, %20 : vector<36x32xi32>
    %22 = arith.extui %21 : vector<36x32xi1> to vector<36x32xi32>
    %23 = arith.addi %19, %22 : vector<36x32xi32>
    %c18_i32 = arith.constant 18 : i32
    %24 = vector.broadcast %c18_i32 : i32 to vector<36x32xi32>
    %25 = arith.cmpi sge, %17, %24 : vector<36x32xi32>
    %26 = arith.extui %25 : vector<36x32xi1> to vector<36x32xi32>
    %27 = arith.addi %23, %26 : vector<36x32xi32>
    %c27_i32 = arith.constant 27 : i32
    %28 = vector.broadcast %c27_i32 : i32 to vector<36x32xi32>
    %29 = arith.cmpi sge, %17, %28 : vector<36x32xi32>
    %30 = arith.extui %29 : vector<36x32xi1> to vector<36x32xi32>
    %31 = arith.addi %27, %30 : vector<36x32xi32>
    %c0_i32_11 = arith.constant 0 : i32
    %32 = vector.broadcast %c0_i32_11 : i32 to vector<36x32xi32>
    %c8_i32 = arith.constant 8 : i32
    %33 = vector.broadcast %c8_i32 : i32 to vector<36x32xi32>
    %34 = arith.cmpi sge, %18, %33 : vector<36x32xi32>
    %35 = arith.extui %34 : vector<36x32xi1> to vector<36x32xi32>
    %36 = arith.addi %32, %35 : vector<36x32xi32>
    %c16_i32 = arith.constant 16 : i32
    %37 = vector.broadcast %c16_i32 : i32 to vector<36x32xi32>
    %38 = arith.cmpi sge, %18, %37 : vector<36x32xi32>
    %39 = arith.extui %38 : vector<36x32xi1> to vector<36x32xi32>
    %40 = arith.addi %36, %39 : vector<36x32xi32>
    %c24_i32 = arith.constant 24 : i32
    %41 = vector.broadcast %c24_i32 : i32 to vector<36x32xi32>
    %42 = arith.cmpi sge, %18, %41 : vector<36x32xi32>
    %43 = arith.extui %42 : vector<36x32xi1> to vector<36x32xi32>
    %44 = arith.addi %40, %43 : vector<36x32xi32>
    %45 = arith.cmpi eq, %31, %44 : vector<36x32xi32>
    %46 = arith.extui %45 : vector<36x32xi1> to vector<36x32xi32>
    %47 = arith.sitofp %46 : vector<36x32xi32> to vector<36x32xf32>
    %48 = tpu.iota {dimensions = array<i32: 0>} : vector<36x9xi32>
    %49 = tpu.iota {dimensions = array<i32: 1>} : vector<36x9xi32>
    %cst_12 = arith.constant 0.000000e+00 : f32
    %50 = vector.broadcast %cst_12 : f32 to vector<36x9xf32>
    %c0_i32_13 = arith.constant 0 : i32
    %51 = vector.broadcast %c0_i32_13 : i32 to vector<36x9xi32>
    %52 = arith.addi %49, %51 : vector<36x9xi32>
    %53 = arith.cmpi eq, %48, %52 : vector<36x9xi32>
    %54 = arith.extui %53 : vector<36x9xi1> to vector<36x9xi32>
    %55 = arith.sitofp %54 : vector<36x9xi32> to vector<36x9xf32>
    %56 = arith.addf %50, %55 : vector<36x9xf32>
    %c9_i32_14 = arith.constant 9 : i32
    %57 = vector.broadcast %c9_i32_14 : i32 to vector<36x9xi32>
    %58 = arith.addi %49, %57 : vector<36x9xi32>
    %59 = arith.cmpi eq, %48, %58 : vector<36x9xi32>
    %60 = arith.extui %59 : vector<36x9xi1> to vector<36x9xi32>
    %61 = arith.sitofp %60 : vector<36x9xi32> to vector<36x9xf32>
    %62 = arith.addf %56, %61 : vector<36x9xf32>
    %c18_i32_15 = arith.constant 18 : i32
    %63 = vector.broadcast %c18_i32_15 : i32 to vector<36x9xi32>
    %64 = arith.addi %49, %63 : vector<36x9xi32>
    %65 = arith.cmpi eq, %48, %64 : vector<36x9xi32>
    %66 = arith.extui %65 : vector<36x9xi1> to vector<36x9xi32>
    %67 = arith.sitofp %66 : vector<36x9xi32> to vector<36x9xf32>
    %68 = arith.addf %62, %67 : vector<36x9xf32>
    %c27_i32_16 = arith.constant 27 : i32
    %69 = vector.broadcast %c27_i32_16 : i32 to vector<36x9xi32>
    %70 = arith.addi %49, %69 : vector<36x9xi32>
    %71 = arith.cmpi eq, %48, %70 : vector<36x9xi32>
    %72 = arith.extui %71 : vector<36x9xi1> to vector<36x9xi32>
    %73 = arith.sitofp %72 : vector<36x9xi32> to vector<36x9xf32>
    %74 = arith.addf %68, %73 : vector<36x9xf32>
    %75 = tpu.iota {dimensions = array<i32: 0>} : vector<9x36xi32>
    %76 = tpu.iota {dimensions = array<i32: 1>} : vector<9x36xi32>
    %cst_17 = arith.constant 0.000000e+00 : f32
    %77 = vector.broadcast %cst_17 : f32 to vector<9x36xf32>
    %c0_i32_18 = arith.constant 0 : i32
    %78 = vector.broadcast %c0_i32_18 : i32 to vector<9x36xi32>
    %79 = arith.addi %75, %78 : vector<9x36xi32>
    %80 = arith.cmpi eq, %76, %79 : vector<9x36xi32>
    %81 = arith.extui %80 : vector<9x36xi1> to vector<9x36xi32>
    %82 = arith.sitofp %81 : vector<9x36xi32> to vector<9x36xf32>
    %83 = arith.addf %77, %82 : vector<9x36xf32>
    %c9_i32_19 = arith.constant 9 : i32
    %84 = vector.broadcast %c9_i32_19 : i32 to vector<9x36xi32>
    %85 = arith.addi %75, %84 : vector<9x36xi32>
    %86 = arith.cmpi eq, %76, %85 : vector<9x36xi32>
    %87 = arith.extui %86 : vector<9x36xi1> to vector<9x36xi32>
    %88 = arith.sitofp %87 : vector<9x36xi32> to vector<9x36xf32>
    %89 = arith.addf %83, %88 : vector<9x36xf32>
    %c18_i32_20 = arith.constant 18 : i32
    %90 = vector.broadcast %c18_i32_20 : i32 to vector<9x36xi32>
    %91 = arith.addi %75, %90 : vector<9x36xi32>
    %92 = arith.cmpi eq, %76, %91 : vector<9x36xi32>
    %93 = arith.extui %92 : vector<9x36xi1> to vector<9x36xi32>
    %94 = arith.sitofp %93 : vector<9x36xi32> to vector<9x36xf32>
    %95 = arith.addf %89, %94 : vector<9x36xf32>
    %c27_i32_21 = arith.constant 27 : i32
    %96 = vector.broadcast %c27_i32_21 : i32 to vector<9x36xi32>
    %97 = arith.addi %75, %96 : vector<9x36xi32>
    %98 = arith.cmpi eq, %76, %97 : vector<9x36xi32>
    %99 = arith.extui %98 : vector<9x36xi1> to vector<9x36xi32>
    %100 = arith.sitofp %99 : vector<9x36xi32> to vector<9x36xf32>
    %101 = arith.addf %95, %100 : vector<9x36xf32>
    %c0_22 = arith.constant 0 : index
    %c0_23 = arith.constant 0 : index
    %c0_24 = arith.constant 0 : index
    %102 = vector.load %arg6[%c0_22, %c0_23, %c0_24] : memref<2x32x192xf32, #tpu.memory_space<vmem>>, vector<1x32x192xf32>
    %103 = vector.shape_cast %102 : vector<1x32x192xf32> to vector<32x192xf32>
    %c0_25 = arith.constant 0 : index
    %c0_26 = arith.constant 0 : index
    %c0_27 = arith.constant 0 : index
    %104 = vector.load %arg7[%c0_25, %c0_26, %c0_27] : memref<2x10x32xf32, #tpu.memory_space<vmem>>, vector<1x10x32xf32>
    %105 = vector.shape_cast %104 : vector<1x10x32xf32> to vector<10x32xf32>
    %106 = vector.extract_strided_slice %103 {offsets = [0, 0], sizes = [32, 96], strides = [1, 1]} : vector<32x192xf32> to vector<32x96xf32>
    %cst_28 = arith.constant dense<0.000000e+00> : vector<9x96xf32>
    %107 = tpu.matmul %16, %106, %cst_28 {dimension_numbers = #tpu.dot_dimension_numbers<[1], [0], [0], [1], [0, 0, 1, 1], [], []>} : vector<9x32xf32>, vector<32x96xf32>, vector<9x96xf32> -> vector<9x96xf32>
    %108 = vector.extract_strided_slice %107 {offsets = [0, 0], sizes = [9, 32], strides = [1, 1]} : vector<9x96xf32> to vector<9x32xf32>
    %109 = vector.extract_strided_slice %105 {offsets = [0, 0], sizes = [1, 32], strides = [1, 1]} : vector<10x32xf32> to vector<1x32xf32>
    %110 = vector.broadcast %109 : vector<1x32xf32> to vector<9x32xf32>
    %111 = arith.addf %108, %110 : vector<9x32xf32>
    %cst_29 = arith.constant 0.353553385 : f32
    %112 = vector.broadcast %cst_29 : f32 to vector<9x32xf32>
    %113 = arith.mulf %111, %112 : vector<9x32xf32>
    %114 = vector.extract_strided_slice %107 {offsets = [0, 32], sizes = [9, 32], strides = [1, 1]} : vector<9x96xf32> to vector<9x32xf32>
    %115 = vector.extract_strided_slice %105 {offsets = [1, 0], sizes = [1, 32], strides = [1, 1]} : vector<10x32xf32> to vector<1x32xf32>
    %116 = vector.broadcast %115 : vector<1x32xf32> to vector<9x32xf32>
    %117 = arith.addf %114, %116 : vector<9x32xf32>
    %118 = vector.extract_strided_slice %107 {offsets = [0, 64], sizes = [9, 32], strides = [1, 1]} : vector<9x96xf32> to vector<9x32xf32>
    %119 = vector.extract_strided_slice %105 {offsets = [2, 0], sizes = [1, 32], strides = [1, 1]} : vector<10x32xf32> to vector<1x32xf32>
    %120 = vector.broadcast %119 : vector<1x32xf32> to vector<9x32xf32>
    %121 = arith.addf %118, %120 : vector<9x32xf32>
    %cst_30 = arith.constant dense<0.000000e+00> : vector<36x32xf32>
    %122 = tpu.matmul %74, %113, %cst_30 {dimension_numbers = #tpu.dot_dimension_numbers<[1], [0], [0], [1], [0, 0, 1, 1], [], []>} : vector<36x9xf32>, vector<9x32xf32>, vector<36x32xf32> -> vector<36x32xf32>
    %123 = arith.mulf %122, %47 : vector<36x32xf32>
    %cst_31 = arith.constant dense<0.000000e+00> : vector<36x9xf32>
    %124 = tpu.matmul %123, %117, %cst_31 {dimension_numbers = #tpu.dot_dimension_numbers<[1], [1], [0], [0], [0, 0, 1, 0], [], []>} : vector<36x32xf32>, vector<9x32xf32>, vector<36x9xf32> -> vector<36x9xf32>
    %cst_32 = arith.constant dense<0xFF800000> : vector<36xf32>
    %125 = vector.multi_reduction <maximumf>, %124, %cst_32 [1] : vector<36x9xf32> to vector<36xf32>
    %126 = vector.shape_cast %125 : vector<36xf32> to vector<36x1xf32>
    %127 = vector.broadcast %126 : vector<36x1xf32> to vector<36x9xf32>
    %128 = arith.subf %124, %127 : vector<36x9xf32>
    %129 = math.exp %128 : vector<36x9xf32>
    %cst_33 = arith.constant dense<0.000000e+00> : vector<36xf32>
    %130 = vector.multi_reduction <add>, %129, %cst_33 [1] : vector<36x9xf32> to vector<36xf32>
    %131 = vector.shape_cast %130 : vector<36xf32> to vector<36x1xf32>
    %132 = tpu.reciprocal %131 {approx = true} : vector<36x1xf32> -> vector<36x1xf32>
    %133 = arith.mulf %131, %132 : vector<36x1xf32>
    %cst_34 = arith.constant 2.000000e+00 : f32
    %134 = vector.broadcast %cst_34 : f32 to vector<36x1xf32>
    %135 = arith.subf %134, %133 : vector<36x1xf32>
    %136 = arith.mulf %132, %135 : vector<36x1xf32>
    %137 = vector.broadcast %136 : vector<36x1xf32> to vector<36x9xf32>
    %138 = arith.mulf %129, %137 : vector<36x9xf32>
    %cst_35 = arith.constant dense<0.000000e+00> : vector<36x32xf32>
    %139 = tpu.matmul %138, %121, %cst_35 {dimension_numbers = #tpu.dot_dimension_numbers<[1], [0], [0], [1], [0, 0, 1, 1], [], []>} : vector<36x9xf32>, vector<9x32xf32>, vector<36x32xf32> -> vector<36x32xf32>
    %140 = arith.mulf %139, %47 : vector<36x32xf32>
    %cst_36 = arith.constant dense<0.000000e+00> : vector<9x32xf32>
    %141 = tpu.matmul %101, %140, %cst_36 {dimension_numbers = #tpu.dot_dimension_numbers<[1], [0], [0], [1], [0, 0, 1, 1], [], []>} : vector<9x36xf32>, vector<36x32xf32>, vector<9x32xf32> -> vector<9x32xf32>
    %142 = vector.extract_strided_slice %103 {offsets = [0, 96], sizes = [32, 32], strides = [1, 1]} : vector<32x192xf32> to vector<32x32xf32>
    %cst_37 = arith.constant dense<0.000000e+00> : vector<9x32xf32>
    %143 = tpu.matmul %141, %142, %cst_37 {dimension_numbers = #tpu.dot_dimension_numbers<[1], [0], [0], [1], [0, 0, 1, 1], [], []>} : vector<9x32xf32>, vector<32x32xf32>, vector<9x32xf32> -> vector<9x32xf32>
    %144 = vector.extract_strided_slice %105 {offsets = [3, 0], sizes = [1, 32], strides = [1, 1]} : vector<10x32xf32> to vector<1x32xf32>
    %145 = vector.broadcast %144 : vector<1x32xf32> to vector<9x32xf32>
    %146 = arith.addf %143, %145 : vector<9x32xf32>
    %147 = arith.addf %16, %146 : vector<9x32xf32>
    %148 = vector.extract_strided_slice %105 {offsets = [4, 0], sizes = [1, 32], strides = [1, 1]} : vector<10x32xf32> to vector<1x32xf32>
    %149 = vector.extract_strided_slice %105 {offsets = [5, 0], sizes = [1, 32], strides = [1, 1]} : vector<10x32xf32> to vector<1x32xf32>
    %cst_38 = arith.constant dense<0.000000e+00> : vector<9xf32>
    %150 = vector.multi_reduction <add>, %147, %cst_38 [1] : vector<9x32xf32> to vector<9xf32>
    %151 = vector.shape_cast %150 : vector<9xf32> to vector<9x1xf32>
    %cst_39 = arith.constant 3.200000e+01 : f32
    %152 = vector.broadcast %cst_39 : f32 to vector<9x1xf32>
    %153 = arith.divf %151, %152 : vector<9x1xf32>
    %154 = vector.broadcast %153 : vector<9x1xf32> to vector<9x32xf32>
    %155 = arith.subf %147, %154 : vector<9x32xf32>
    %156 = arith.mulf %155, %155 : vector<9x32xf32>
    %cst_40 = arith.constant dense<0.000000e+00> : vector<9xf32>
    %157 = vector.multi_reduction <add>, %156, %cst_40 [1] : vector<9x32xf32> to vector<9xf32>
    %158 = vector.shape_cast %157 : vector<9xf32> to vector<9x1xf32>
    %cst_41 = arith.constant 3.200000e+01 : f32
    %159 = vector.broadcast %cst_41 : f32 to vector<9x1xf32>
    %160 = arith.divf %158, %159 : vector<9x1xf32>
    %cst_42 = arith.constant 9.99999974E-6 : f32
    %161 = vector.broadcast %cst_42 : f32 to vector<9x1xf32>
    %162 = arith.addf %160, %161 : vector<9x1xf32>
    %163 = math.rsqrt %162 : vector<9x1xf32>
    %164 = vector.broadcast %163 : vector<9x1xf32> to vector<9x32xf32>
    %165 = arith.mulf %155, %164 : vector<9x32xf32>
    %166 = vector.broadcast %148 : vector<1x32xf32> to vector<9x32xf32>
    %167 = arith.mulf %165, %166 : vector<9x32xf32>
    %168 = vector.broadcast %149 : vector<1x32xf32> to vector<9x32xf32>
    %169 = arith.addf %167, %168 : vector<9x32xf32>
    %170 = vector.extract_strided_slice %103 {offsets = [0, 128], sizes = [32, 32], strides = [1, 1]} : vector<32x192xf32> to vector<32x32xf32>
    %cst_43 = arith.constant dense<0.000000e+00> : vector<9x32xf32>
    %171 = tpu.matmul %169, %170, %cst_43 {dimension_numbers = #tpu.dot_dimension_numbers<[1], [0], [0], [1], [0, 0, 1, 1], [], []>} : vector<9x32xf32>, vector<32x32xf32>, vector<9x32xf32> -> vector<9x32xf32>
    %172 = vector.extract_strided_slice %105 {offsets = [6, 0], sizes = [1, 32], strides = [1, 1]} : vector<10x32xf32> to vector<1x32xf32>
    %173 = vector.broadcast %172 : vector<1x32xf32> to vector<9x32xf32>
    %174 = arith.addf %171, %173 : vector<9x32xf32>
    %cst_44 = arith.constant 5.000000e-01 : f32
    %175 = vector.broadcast %cst_44 : f32 to vector<9x32xf32>
    %176 = arith.mulf %175, %174 : vector<9x32xf32>
    %cst_45 = arith.constant 4.471500e-02 : f32
    %177 = vector.broadcast %cst_45 : f32 to vector<9x32xf32>
    %178 = arith.mulf %177, %174 : vector<9x32xf32>
    %179 = arith.mulf %178, %174 : vector<9x32xf32>
    %180 = arith.mulf %179, %174 : vector<9x32xf32>
    %181 = arith.addf %174, %180 : vector<9x32xf32>
    %cst_46 = arith.constant 0.797884583 : f32
    %182 = vector.broadcast %cst_46 : f32 to vector<9x32xf32>
    %183 = arith.mulf %182, %181 : vector<9x32xf32>
    %184 = math.tanh %183 : vector<9x32xf32>
    %cst_47 = arith.constant 1.000000e+00 : f32
    %185 = vector.broadcast %cst_47 : f32 to vector<9x32xf32>
    %186 = arith.addf %185, %184 : vector<9x32xf32>
    %187 = arith.mulf %176, %186 : vector<9x32xf32>
    %188 = vector.extract_strided_slice %103 {offsets = [0, 160], sizes = [32, 32], strides = [1, 1]} : vector<32x192xf32> to vector<32x32xf32>
    %cst_48 = arith.constant dense<0.000000e+00> : vector<9x32xf32>
    %189 = tpu.matmul %187, %188, %cst_48 {dimension_numbers = #tpu.dot_dimension_numbers<[1], [0], [0], [1], [0, 0, 1, 1], [], []>} : vector<9x32xf32>, vector<32x32xf32>, vector<9x32xf32> -> vector<9x32xf32>
    %190 = vector.extract_strided_slice %105 {offsets = [7, 0], sizes = [1, 32], strides = [1, 1]} : vector<10x32xf32> to vector<1x32xf32>
    %191 = vector.broadcast %190 : vector<1x32xf32> to vector<9x32xf32>
    %192 = arith.addf %189, %191 : vector<9x32xf32>
    %193 = arith.addf %169, %192 : vector<9x32xf32>
    %194 = vector.extract_strided_slice %105 {offsets = [8, 0], sizes = [1, 32], strides = [1, 1]} : vector<10x32xf32> to vector<1x32xf32>
    %195 = vector.extract_strided_slice %105 {offsets = [9, 0], sizes = [1, 32], strides = [1, 1]} : vector<10x32xf32> to vector<1x32xf32>
    %cst_49 = arith.constant dense<0.000000e+00> : vector<9xf32>
    %196 = vector.multi_reduction <add>, %193, %cst_49 [1] : vector<9x32xf32> to vector<9xf32>
    %197 = vector.shape_cast %196 : vector<9xf32> to vector<9x1xf32>
    %cst_50 = arith.constant 3.200000e+01 : f32
    %198 = vector.broadcast %cst_50 : f32 to vector<9x1xf32>
    %199 = arith.divf %197, %198 : vector<9x1xf32>
    %200 = vector.broadcast %199 : vector<9x1xf32> to vector<9x32xf32>
    %201 = arith.subf %193, %200 : vector<9x32xf32>
    %202 = arith.mulf %201, %201 : vector<9x32xf32>
    %cst_51 = arith.constant dense<0.000000e+00> : vector<9xf32>
    %203 = vector.multi_reduction <add>, %202, %cst_51 [1] : vector<9x32xf32> to vector<9xf32>
    %204 = vector.shape_cast %203 : vector<9xf32> to vector<9x1xf32>
    %cst_52 = arith.constant 3.200000e+01 : f32
    %205 = vector.broadcast %cst_52 : f32 to vector<9x1xf32>
    %206 = arith.divf %204, %205 : vector<9x1xf32>
    %cst_53 = arith.constant 9.99999974E-6 : f32
    %207 = vector.broadcast %cst_53 : f32 to vector<9x1xf32>
    %208 = arith.addf %206, %207 : vector<9x1xf32>
    %209 = math.rsqrt %208 : vector<9x1xf32>
    %210 = vector.broadcast %209 : vector<9x1xf32> to vector<9x32xf32>
    %211 = arith.mulf %201, %210 : vector<9x32xf32>
    %212 = vector.broadcast %194 : vector<1x32xf32> to vector<9x32xf32>
    %213 = arith.mulf %211, %212 : vector<9x32xf32>
    %214 = vector.broadcast %195 : vector<1x32xf32> to vector<9x32xf32>
    %215 = arith.addf %213, %214 : vector<9x32xf32>
    %c1_54 = arith.constant 1 : index
    %c0_55 = arith.constant 0 : index
    %c0_56 = arith.constant 0 : index
    %216 = vector.load %arg6[%c1_54, %c0_55, %c0_56] : memref<2x32x192xf32, #tpu.memory_space<vmem>>, vector<1x32x192xf32>
    %217 = vector.shape_cast %216 : vector<1x32x192xf32> to vector<32x192xf32>
    %c1_57 = arith.constant 1 : index
    %c0_58 = arith.constant 0 : index
    %c0_59 = arith.constant 0 : index
    %218 = vector.load %arg7[%c1_57, %c0_58, %c0_59] : memref<2x10x32xf32, #tpu.memory_space<vmem>>, vector<1x10x32xf32>
    %219 = vector.shape_cast %218 : vector<1x10x32xf32> to vector<10x32xf32>
    %220 = vector.extract_strided_slice %217 {offsets = [0, 0], sizes = [32, 96], strides = [1, 1]} : vector<32x192xf32> to vector<32x96xf32>
    %cst_60 = arith.constant dense<0.000000e+00> : vector<9x96xf32>
    %221 = tpu.matmul %215, %220, %cst_60 {dimension_numbers = #tpu.dot_dimension_numbers<[1], [0], [0], [1], [0, 0, 1, 1], [], []>} : vector<9x32xf32>, vector<32x96xf32>, vector<9x96xf32> -> vector<9x96xf32>
    %222 = vector.extract_strided_slice %221 {offsets = [0, 0], sizes = [9, 32], strides = [1, 1]} : vector<9x96xf32> to vector<9x32xf32>
    %223 = vector.extract_strided_slice %219 {offsets = [0, 0], sizes = [1, 32], strides = [1, 1]} : vector<10x32xf32> to vector<1x32xf32>
    %224 = vector.broadcast %223 : vector<1x32xf32> to vector<9x32xf32>
    %225 = arith.addf %222, %224 : vector<9x32xf32>
    %cst_61 = arith.constant 0.353553385 : f32
    %226 = vector.broadcast %cst_61 : f32 to vector<9x32xf32>
    %227 = arith.mulf %225, %226 : vector<9x32xf32>
    %228 = vector.extract_strided_slice %221 {offsets = [0, 32], sizes = [9, 32], strides = [1, 1]} : vector<9x96xf32> to vector<9x32xf32>
    %229 = vector.extract_strided_slice %219 {offsets = [1, 0], sizes = [1, 32], strides = [1, 1]} : vector<10x32xf32> to vector<1x32xf32>
    %230 = vector.broadcast %229 : vector<1x32xf32> to vector<9x32xf32>
    %231 = arith.addf %228, %230 : vector<9x32xf32>
    %232 = vector.extract_strided_slice %221 {offsets = [0, 64], sizes = [9, 32], strides = [1, 1]} : vector<9x96xf32> to vector<9x32xf32>
    %233 = vector.extract_strided_slice %219 {offsets = [2, 0], sizes = [1, 32], strides = [1, 1]} : vector<10x32xf32> to vector<1x32xf32>
    %234 = vector.broadcast %233 : vector<1x32xf32> to vector<9x32xf32>
    %235 = arith.addf %232, %234 : vector<9x32xf32>
    %cst_62 = arith.constant dense<0.000000e+00> : vector<36x32xf32>
    %236 = tpu.matmul %74, %227, %cst_62 {dimension_numbers = #tpu.dot_dimension_numbers<[1], [0], [0], [1], [0, 0, 1, 1], [], []>} : vector<36x9xf32>, vector<9x32xf32>, vector<36x32xf32> -> vector<36x32xf32>
    %237 = arith.mulf %236, %47 : vector<36x32xf32>
    %cst_63 = arith.constant dense<0.000000e+00> : vector<36x9xf32>
    %238 = tpu.matmul %237, %231, %cst_63 {dimension_numbers = #tpu.dot_dimension_numbers<[1], [1], [0], [0], [0, 0, 1, 0], [], []>} : vector<36x32xf32>, vector<9x32xf32>, vector<36x9xf32> -> vector<36x9xf32>
    %cst_64 = arith.constant dense<0xFF800000> : vector<36xf32>
    %239 = vector.multi_reduction <maximumf>, %238, %cst_64 [1] : vector<36x9xf32> to vector<36xf32>
    %240 = vector.shape_cast %239 : vector<36xf32> to vector<36x1xf32>
    %241 = vector.broadcast %240 : vector<36x1xf32> to vector<36x9xf32>
    %242 = arith.subf %238, %241 : vector<36x9xf32>
    %243 = math.exp %242 : vector<36x9xf32>
    %cst_65 = arith.constant dense<0.000000e+00> : vector<36xf32>
    %244 = vector.multi_reduction <add>, %243, %cst_65 [1] : vector<36x9xf32> to vector<36xf32>
    %245 = vector.shape_cast %244 : vector<36xf32> to vector<36x1xf32>
    %246 = tpu.reciprocal %245 {approx = true} : vector<36x1xf32> -> vector<36x1xf32>
    %247 = arith.mulf %245, %246 : vector<36x1xf32>
    %cst_66 = arith.constant 2.000000e+00 : f32
    %248 = vector.broadcast %cst_66 : f32 to vector<36x1xf32>
    %249 = arith.subf %248, %247 : vector<36x1xf32>
    %250 = arith.mulf %246, %249 : vector<36x1xf32>
    %251 = vector.broadcast %250 : vector<36x1xf32> to vector<36x9xf32>
    %252 = arith.mulf %243, %251 : vector<36x9xf32>
    %cst_67 = arith.constant dense<0.000000e+00> : vector<36x32xf32>
    %253 = tpu.matmul %252, %235, %cst_67 {dimension_numbers = #tpu.dot_dimension_numbers<[1], [0], [0], [1], [0, 0, 1, 1], [], []>} : vector<36x9xf32>, vector<9x32xf32>, vector<36x32xf32> -> vector<36x32xf32>
    %254 = arith.mulf %253, %47 : vector<36x32xf32>
    %cst_68 = arith.constant dense<0.000000e+00> : vector<9x32xf32>
    %255 = tpu.matmul %101, %254, %cst_68 {dimension_numbers = #tpu.dot_dimension_numbers<[1], [0], [0], [1], [0, 0, 1, 1], [], []>} : vector<9x36xf32>, vector<36x32xf32>, vector<9x32xf32> -> vector<9x32xf32>
    %256 = vector.extract_strided_slice %217 {offsets = [0, 96], sizes = [32, 32], strides = [1, 1]} : vector<32x192xf32> to vector<32x32xf32>
    %cst_69 = arith.constant dense<0.000000e+00> : vector<9x32xf32>
    %257 = tpu.matmul %255, %256, %cst_69 {dimension_numbers = #tpu.dot_dimension_numbers<[1], [0], [0], [1], [0, 0, 1, 1], [], []>} : vector<9x32xf32>, vector<32x32xf32>, vector<9x32xf32> -> vector<9x32xf32>
    %258 = vector.extract_strided_slice %219 {offsets = [3, 0], sizes = [1, 32], strides = [1, 1]} : vector<10x32xf32> to vector<1x32xf32>
    %259 = vector.broadcast %258 : vector<1x32xf32> to vector<9x32xf32>
    %260 = arith.addf %257, %259 : vector<9x32xf32>
    %261 = arith.addf %215, %260 : vector<9x32xf32>
    %262 = vector.extract_strided_slice %219 {offsets = [4, 0], sizes = [1, 32], strides = [1, 1]} : vector<10x32xf32> to vector<1x32xf32>
    %263 = vector.extract_strided_slice %219 {offsets = [5, 0], sizes = [1, 32], strides = [1, 1]} : vector<10x32xf32> to vector<1x32xf32>
    %cst_70 = arith.constant dense<0.000000e+00> : vector<9xf32>
    %264 = vector.multi_reduction <add>, %261, %cst_70 [1] : vector<9x32xf32> to vector<9xf32>
    %265 = vector.shape_cast %264 : vector<9xf32> to vector<9x1xf32>
    %cst_71 = arith.constant 3.200000e+01 : f32
    %266 = vector.broadcast %cst_71 : f32 to vector<9x1xf32>
    %267 = arith.divf %265, %266 : vector<9x1xf32>
    %268 = vector.broadcast %267 : vector<9x1xf32> to vector<9x32xf32>
    %269 = arith.subf %261, %268 : vector<9x32xf32>
    %270 = arith.mulf %269, %269 : vector<9x32xf32>
    %cst_72 = arith.constant dense<0.000000e+00> : vector<9xf32>
    %271 = vector.multi_reduction <add>, %270, %cst_72 [1] : vector<9x32xf32> to vector<9xf32>
    %272 = vector.shape_cast %271 : vector<9xf32> to vector<9x1xf32>
    %cst_73 = arith.constant 3.200000e+01 : f32
    %273 = vector.broadcast %cst_73 : f32 to vector<9x1xf32>
    %274 = arith.divf %272, %273 : vector<9x1xf32>
    %cst_74 = arith.constant 9.99999974E-6 : f32
    %275 = vector.broadcast %cst_74 : f32 to vector<9x1xf32>
    %276 = arith.addf %274, %275 : vector<9x1xf32>
    %277 = math.rsqrt %276 : vector<9x1xf32>
    %278 = vector.broadcast %277 : vector<9x1xf32> to vector<9x32xf32>
    %279 = arith.mulf %269, %278 : vector<9x32xf32>
    %280 = vector.broadcast %262 : vector<1x32xf32> to vector<9x32xf32>
    %281 = arith.mulf %279, %280 : vector<9x32xf32>
    %282 = vector.broadcast %263 : vector<1x32xf32> to vector<9x32xf32>
    %283 = arith.addf %281, %282 : vector<9x32xf32>
    %284 = vector.extract_strided_slice %217 {offsets = [0, 128], sizes = [32, 32], strides = [1, 1]} : vector<32x192xf32> to vector<32x32xf32>
    %cst_75 = arith.constant dense<0.000000e+00> : vector<9x32xf32>
    %285 = tpu.matmul %283, %284, %cst_75 {dimension_numbers = #tpu.dot_dimension_numbers<[1], [0], [0], [1], [0, 0, 1, 1], [], []>} : vector<9x32xf32>, vector<32x32xf32>, vector<9x32xf32> -> vector<9x32xf32>
    %286 = vector.extract_strided_slice %219 {offsets = [6, 0], sizes = [1, 32], strides = [1, 1]} : vector<10x32xf32> to vector<1x32xf32>
    %287 = vector.broadcast %286 : vector<1x32xf32> to vector<9x32xf32>
    %288 = arith.addf %285, %287 : vector<9x32xf32>
    %cst_76 = arith.constant 5.000000e-01 : f32
    %289 = vector.broadcast %cst_76 : f32 to vector<9x32xf32>
    %290 = arith.mulf %289, %288 : vector<9x32xf32>
    %cst_77 = arith.constant 4.471500e-02 : f32
    %291 = vector.broadcast %cst_77 : f32 to vector<9x32xf32>
    %292 = arith.mulf %291, %288 : vector<9x32xf32>
    %293 = arith.mulf %292, %288 : vector<9x32xf32>
    %294 = arith.mulf %293, %288 : vector<9x32xf32>
    %295 = arith.addf %288, %294 : vector<9x32xf32>
    %cst_78 = arith.constant 0.797884583 : f32
    %296 = vector.broadcast %cst_78 : f32 to vector<9x32xf32>
    %297 = arith.mulf %296, %295 : vector<9x32xf32>
    %298 = math.tanh %297 : vector<9x32xf32>
    %cst_79 = arith.constant 1.000000e+00 : f32
    %299 = vector.broadcast %cst_79 : f32 to vector<9x32xf32>
    %300 = arith.addf %299, %298 : vector<9x32xf32>
    %301 = arith.mulf %290, %300 : vector<9x32xf32>
    %302 = vector.extract_strided_slice %217 {offsets = [0, 160], sizes = [32, 32], strides = [1, 1]} : vector<32x192xf32> to vector<32x32xf32>
    %cst_80 = arith.constant dense<0.000000e+00> : vector<9x32xf32>
    %303 = tpu.matmul %301, %302, %cst_80 {dimension_numbers = #tpu.dot_dimension_numbers<[1], [0], [0], [1], [0, 0, 1, 1], [], []>} : vector<9x32xf32>, vector<32x32xf32>, vector<9x32xf32> -> vector<9x32xf32>
    %304 = vector.extract_strided_slice %219 {offsets = [7, 0], sizes = [1, 32], strides = [1, 1]} : vector<10x32xf32> to vector<1x32xf32>
    %305 = vector.broadcast %304 : vector<1x32xf32> to vector<9x32xf32>
    %306 = arith.addf %303, %305 : vector<9x32xf32>
    %307 = arith.addf %283, %306 : vector<9x32xf32>
    %308 = vector.extract_strided_slice %219 {offsets = [8, 0], sizes = [1, 32], strides = [1, 1]} : vector<10x32xf32> to vector<1x32xf32>
    %309 = vector.extract_strided_slice %219 {offsets = [9, 0], sizes = [1, 32], strides = [1, 1]} : vector<10x32xf32> to vector<1x32xf32>
    %cst_81 = arith.constant dense<0.000000e+00> : vector<9xf32>
    %310 = vector.multi_reduction <add>, %307, %cst_81 [1] : vector<9x32xf32> to vector<9xf32>
    %311 = vector.shape_cast %310 : vector<9xf32> to vector<9x1xf32>
    %cst_82 = arith.constant 3.200000e+01 : f32
    %312 = vector.broadcast %cst_82 : f32 to vector<9x1xf32>
    %313 = arith.divf %311, %312 : vector<9x1xf32>
    %314 = vector.broadcast %313 : vector<9x1xf32> to vector<9x32xf32>
    %315 = arith.subf %307, %314 : vector<9x32xf32>
    %316 = arith.mulf %315, %315 : vector<9x32xf32>
    %cst_83 = arith.constant dense<0.000000e+00> : vector<9xf32>
    %317 = vector.multi_reduction <add>, %316, %cst_83 [1] : vector<9x32xf32> to vector<9xf32>
    %318 = vector.shape_cast %317 : vector<9xf32> to vector<9x1xf32>
    %cst_84 = arith.constant 3.200000e+01 : f32
    %319 = vector.broadcast %cst_84 : f32 to vector<9x1xf32>
    %320 = arith.divf %318, %319 : vector<9x1xf32>
    %cst_85 = arith.constant 9.99999974E-6 : f32
    %321 = vector.broadcast %cst_85 : f32 to vector<9x1xf32>
    %322 = arith.addf %320, %321 : vector<9x1xf32>
    %323 = math.rsqrt %322 : vector<9x1xf32>
    %324 = vector.broadcast %323 : vector<9x1xf32> to vector<9x32xf32>
    %325 = arith.mulf %315, %324 : vector<9x32xf32>
    %326 = vector.broadcast %308 : vector<1x32xf32> to vector<9x32xf32>
    %327 = arith.mulf %325, %326 : vector<9x32xf32>
    %328 = vector.broadcast %309 : vector<1x32xf32> to vector<9x32xf32>
    %329 = arith.addf %327, %328 : vector<9x32xf32>
    %330 = vector.extract_strided_slice %329 {offsets = [8, 0], sizes = [1, 32], strides = [1, 1]} : vector<9x32xf32> to vector<1x32xf32>
    %c0_86 = arith.constant 0 : index
    %c0_87 = arith.constant 0 : index
    %331 = vector.load %arg9[%c0_86, %c0_87] : memref<3x32xf32, #tpu.memory_space<vmem>>, vector<1x32xf32>
    %c1_88 = arith.constant 1 : index
    %c0_89 = arith.constant 0 : index
    %332 = vector.load %arg9[%c1_88, %c0_89] : memref<3x32xf32, #tpu.memory_space<vmem>>, vector<1x32xf32>
    %cst_90 = arith.constant dense<0.000000e+00> : vector<1xf32>
    %333 = vector.multi_reduction <add>, %330, %cst_90 [1] : vector<1x32xf32> to vector<1xf32>
    %334 = vector.shape_cast %333 : vector<1xf32> to vector<1x1xf32>
    %cst_91 = arith.constant 3.200000e+01 : f32
    %335 = vector.broadcast %cst_91 : f32 to vector<1x1xf32>
    %336 = arith.divf %334, %335 : vector<1x1xf32>
    %337 = vector.broadcast %336 : vector<1x1xf32> to vector<1x32xf32>
    %338 = arith.subf %330, %337 : vector<1x32xf32>
    %339 = arith.mulf %338, %338 : vector<1x32xf32>
    %cst_92 = arith.constant dense<0.000000e+00> : vector<1xf32>
    %340 = vector.multi_reduction <add>, %339, %cst_92 [1] : vector<1x32xf32> to vector<1xf32>
    %341 = vector.shape_cast %340 : vector<1xf32> to vector<1x1xf32>
    %cst_93 = arith.constant 3.200000e+01 : f32
    %342 = vector.broadcast %cst_93 : f32 to vector<1x1xf32>
    %343 = arith.divf %341, %342 : vector<1x1xf32>
    %cst_94 = arith.constant 9.99999974E-6 : f32
    %344 = vector.broadcast %cst_94 : f32 to vector<1x1xf32>
    %345 = arith.addf %343, %344 : vector<1x1xf32>
    %346 = math.rsqrt %345 : vector<1x1xf32>
    %347 = vector.broadcast %346 : vector<1x1xf32> to vector<1x32xf32>
    %348 = arith.mulf %338, %347 : vector<1x32xf32>
    %349 = arith.mulf %348, %331 : vector<1x32xf32>
    %350 = arith.addf %349, %332 : vector<1x32xf32>
    %c0_95 = arith.constant 0 : index
    %c0_96 = arith.constant 0 : index
    %351 = vector.load %arg8[%c0_95, %c0_96] : memref<32x32xf32, #tpu.memory_space<vmem>>, vector<32x32xf32>
    %cst_97 = arith.constant dense<0.000000e+00> : vector<1x32xf32>
    %352 = tpu.matmul %350, %351, %cst_97 {dimension_numbers = #tpu.dot_dimension_numbers<[1], [0], [0], [1], [0, 0, 1, 1], [], []>} : vector<1x32xf32>, vector<32x32xf32>, vector<1x32xf32> -> vector<1x32xf32>
    %c2 = arith.constant 2 : index
    %c0_98 = arith.constant 0 : index
    %353 = vector.load %arg9[%c2, %c0_98] : memref<3x32xf32, #tpu.memory_space<vmem>>, vector<1x32xf32>
    %354 = arith.addf %352, %353 : vector<1x32xf32>
    %355 = vector.shape_cast %354 : vector<1x32xf32> to vector<1x1x32xf32>
    %c0_99 = arith.constant 0 : index
    %c0_100 = arith.constant 0 : index
    %c0_101 = arith.constant 0 : index
    %356 = vector.load %arg10[%c0_99, %c0_100, %c0_101] : memref<1x1x32xf32, #tpu.memory_space<vmem>>, vector<1x1x32xf32>
    tpu.vector_store %arg10[%c0_99, %c0_100, %c0_101], %355 {strides = array<i32>} : memref<1x1x32xf32, #tpu.memory_space<vmem>>, vector<1x1x32xf32>,
    return
  }
  func.func @transform_0(%arg0: i32) -> (i32, i32) {
    %c0_i32 = arith.constant 0 : i32
    %c0_i32_0 = arith.constant 0 : i32
    return %arg0, %c0_i32 : i32, i32
  }
  func.func @transform_1(%arg0: i32) -> (i32, i32) {
    %c0_i32 = arith.constant 0 : i32
    %c0_i32_0 = arith.constant 0 : i32
    %c0_i32_1 = arith.constant 0 : i32
    return %c0_i32, %c0_i32_0 : i32, i32
  }
  func.func @transform_2(%arg0: i32) -> (i32, i32) {
    %c0_i32 = arith.constant 0 : i32
    %c0_i32_0 = arith.constant 0 : i32
    %c0_i32_1 = arith.constant 0 : i32
    return %c0_i32, %c0_i32_0 : i32, i32
  }
  func.func @transform_3(%arg0: i32) -> (i32, i32) {
    %c0_i32 = arith.constant 0 : i32
    %c0_i32_0 = arith.constant 0 : i32
    %c0_i32_1 = arith.constant 0 : i32
    return %c0_i32, %c0_i32_0 : i32, i32
  }
  func.func @transform_4(%arg0: i32) -> (i32, i32) {
    %c0_i32 = arith.constant 0 : i32
    %c0_i32_0 = arith.constant 0 : i32
    %c0_i32_1 = arith.constant 0 : i32
    return %c0_i32, %c0_i32_0 : i32, i32
  }
  func.func @transform_5(%arg0: i32) -> (i32, i32, i32) {
    %c0_i32 = arith.constant 0 : i32
    %c0_i32_0 = arith.constant 0 : i32
    %c0_i32_1 = arith.constant 0 : i32
    %c0_i32_2 = arith.constant 0 : i32
    return %c0_i32, %c0_i32_0, %c0_i32_1 : i32, i32, i32
  }
  func.func @transform_6(%arg0: i32) -> (i32, i32, i32) {
    %c0_i32 = arith.constant 0 : i32
    %c0_i32_0 = arith.constant 0 : i32
    %c0_i32_1 = arith.constant 0 : i32
    %c0_i32_2 = arith.constant 0 : i32
    return %c0_i32, %c0_i32_0, %c0_i32_1 : i32, i32, i32
  }
  func.func @transform_7(%arg0: i32) -> (i32, i32) {
    %c0_i32 = arith.constant 0 : i32
    %c0_i32_0 = arith.constant 0 : i32
    %c0_i32_1 = arith.constant 0 : i32
    return %c0_i32, %c0_i32_0 : i32, i32
  }
  func.func @transform_8(%arg0: i32) -> (i32, i32) {
    %c0_i32 = arith.constant 0 : i32
    %c0_i32_0 = arith.constant 0 : i32
    %c0_i32_1 = arith.constant 0 : i32
    return %c0_i32, %c0_i32_0 : i32, i32
  }
  func.func @transform_9(%arg0: i32) -> (i32, i32, i32) {
    %c0_i32 = arith.constant 0 : i32
    %c0_i32_0 = arith.constant 0 : i32
    %c0_i32_1 = arith.constant 0 : i32
    return %arg0, %c0_i32, %c0_i32_0 : i32, i32, i32
  }
}

</mosaic_0001>

<llo_original>
// kernel: tpu_custom_call.1
$region0: #{tpu_custom_call.1}
  #allocation0 [shape = 'u32[]', space=smem, size = 0x4, offset = 0x4, fixed_abs, tag = 'smem constant byte address 0x4 - core index']
  #allocation1 [shape = 'u32[72,128]{1,0:T(1,128)}', space=vmem, size = 0x9000, scoped, tag = 'internal scratch']
  %s0 = inlined_call_operand.vmem [shape: s32[16,1], index: 0, kind: input, shape index: {}]
  %s1 = inlined_call_operand.vmem [shape: f32[100,32], index: 1, kind: input, shape index: {}]
  %s2 = inlined_call_operand.hbm [shape: f32[32,32], index: 2, kind: input, shape index: {}]
  %s3 = inlined_call_operand.vmem [shape: f32[2,32], index: 3, kind: input, shape index: {}]
  %s4 = inlined_call_operand.vmem [shape: f32[9,32], index: 4, kind: input, shape index: {}]
  %s5 = inlined_call_operand.vmem [shape: f32[2,32,192], index: 5, kind: input, shape index: {}]
  %s6 = inlined_call_operand.vmem [shape: f32[2,10,32], index: 6, kind: input, shape index: {}]
  %s7 = inlined_call_operand.hbm [shape: f32[32,32], index: 7, kind: input, shape index: {}]
  %s8 = inlined_call_operand.vmem [shape: f32[3,32], index: 8, kind: input, shape index: {}]
  %s9 = inlined_call_operand.hbm [shape: f32[2,1,32], index: 9, kind: output, shape index: {}]
  %s10 = sld [smem:[#allocation0]]
  $region77: #{tpu_custom_call.1} parent=0
    _
  %s12 = ssub.s32 1, %s10
  %s13 = scalar_select 0, %s12, %s10
  $region1: #{tpu_custom_call.1} parent=0
    #allocation2 [shape = 'u8[16384]{0}', space=vmem, size = 0x4000, scoped, tag = 'input window, operand 2, single buffered']
    #allocation3 [shape = 's32[2]{0}', space=sflag, size = 0x8, scoped, tag = 'scoped memory for tpu_custom_call.1']
    #allocation4 [shape = 's32[2]{0}', space=sflag, size = 0x8, scoped, tag = 'scoped memory for tpu_custom_call.1']
    #allocation5 [shape = 'u8[16384]{0}', space=vmem, size = 0x4000, scoped, tag = 'input window, operand 7, single buffered']
    #allocation6 [shape = 's32[1]{0}', space=sflag, size = 0x4, scoped, tag = 'scoped memory for tpu_custom_call.1']
    #allocation7 [shape = 'u8[1024]{0}', space=vmem, size = 0x400, scoped, tag = 'output window, operand 0']
    %14 = vsyncpa [#allocation3], 0
    %15 = vsyncpa [#allocation6], 0
    %16 = vsyncpa [#allocation4], 0
    %s17 = scalar_lea.sflag [#allocation4], 1
    %18 = vsyncpa %s17, 0
    loop: start=0, step=1, limit=4
    $region2: #{tpu_custom_call.1} parent=1 // loop_pre_header
      _
    $region3: #{tpu_custom_call.1} parent=1 // loop_header
      %s20 = sphi 0, %s24
      %p21 = scmp.ge.s32.totalorder %s20, 4
      %s30 = sphi 0, %s32
      %s33 = sphi 0, %s30
      %s34 = sphi 0, %s33
      %s50 = sphi 0, %s34
      %s54 = sphi 0, %s54
      %s56 = sphi 0, %s54
      %s57 = sphi 0, %s56
      %s71 = sphi 0, %s57
      %s75 = sphi 0, %s75
      %s77 = sphi 0, %s75
      %s78 = sphi 0, %s77
      %s92 = sphi 0, %s78
      %s96 = sphi 0, %s96
      %s98 = sphi 0, %s96
      %s99 = sphi 0, %s98
      %s113 = sphi 0, %s99
      %s117 = sphi 0, %s117
      %s119 = sphi 0, %s117
      %s120 = sphi 0, %s119
      %s134 = sphi 0, %s120
      %s138 = sphi 0, %s138
      %s140 = sphi 0, %s138
      %s141 = sphi 0, %s140
      %s155 = sphi 0, %s141
      %s159 = sphi 0, %s159
      %s161 = sphi 0, %s159
      %s162 = sphi 0, %s161
      %s176 = sphi 0, %s162
      %s180 = sphi 0, %s180
      %s182 = sphi 0, %s180
      %s183 = sphi 0, %s182
      %s197 = sphi 0, %s183
      %s201 = sphi 0, %s201
      %s203 = sphi 0, %s201
      %s204 = sphi 0, %s203
      %s218 = sphi 0, %s204
      %s224 = sphi 0, %s226
      %s227 = sphi 0, %s224
      %s228 = sphi 0, %s227
      %s244 = sphi 0, %s228
    $region4: #{tpu_custom_call.1} parent=1 // loop_header_branch
      %23 = sbr.rel (%p21) target = $region8
    $region5: #{tpu_custom_call.1} parent=1 // loop_body
      %s25 = ssub.s32 %s20, 1
      %s26 = ssub.s32 %s20, 2
      %s27 = sadd.s32 %s20, 1
      %s28 = ssub.s32 %s20, %s27
      %p29 = scmp.eq.s32.totalorder %s28, 0
      %s31 = sadd.s32 %s30, 1
      %s32 = scalar_select %p29, %s30, %s31
      %p35 = pneg %p29
      %p36 = scmp.eq.s32.totalorder %s20, 1
      %p37 = por %p35, %p36
      %p38 = scmp.ne.s32.totalorder %s30, %s33
      %p39 = scmp.eq.s32.totalorder %s20, 0
      %p40 = por %p38, %p39
      %p41 = scmp.ne.s32.totalorder %s30, %s33
      %p42 = scmp.eq.s32.totalorder %s25, 1
      %p43 = por %p41, %p42
      %p44 = scmp.ne.s32.totalorder %s33, %s34
      %p45 = scmp.eq.s32.totalorder %s25, 0
      %p46 = por %p44, %p45
      %p47 = scmp.ne.s32.totalorder %s33, %s34
      %p48 = scmp.eq.s32.totalorder %s26, 1
      %p49 = por %p47, %p48
      %p51 = scmp.ne.s32.totalorder %s34, %s50
      %p52 = scmp.eq.s32.totalorder %s26, 0
      %p53 = por %p51, %p52
      %s55 = sadd.s32 %s54, 1
      %p58 = scmp.eq.s32.totalorder %s20, 1
      %p59 = scmp.ne.s32.totalorder %s54, %s56
      %p60 = scmp.eq.s32.totalorder %s20, 0
      %p61 = por %p59, %p60
      %p62 = scmp.ne.s32.totalorder %s54, %s56
      %p63 = scmp.eq.s32.totalorder %s25, 1
      %p64 = por %p62, %p63
      %p65 = scmp.ne.s32.totalorder %s56, %s57
      %p66 = scmp.eq.s32.totalorder %s25, 0
      %p67 = por %p65, %p66
      %p68 = scmp.ne.s32.totalorder %s56, %s57
      %p69 = scmp.eq.s32.totalorder %s26, 1
      %p70 = por %p68, %p69
      %p72 = scmp.ne.s32.totalorder %s57, %s71
      %p73 = scmp.eq.s32.totalorder %s26, 0
      %p74 = por %p72, %p73
      %s76 = sadd.s32 %s75, 1
      %p79 = scmp.eq.s32.totalorder %s20, 1
      %p80 = scmp.ne.s32.totalorder %s75, %s77
      %p81 = scmp.eq.s32.totalorder %s20, 0
      %p82 = por %p80, %p81
      %p83 = scmp.ne.s32.totalorder %s75, %s77
      %p84 = scmp.eq.s32.totalorder %s25, 1
      %p85 = por %p83, %p84
      %p86 = scmp.ne.s32.totalorder %s77, %s78
      %p87 = scmp.eq.s32.totalorder %s25, 0
      %p88 = por %p86, %p87
      %p89 = scmp.ne.s32.totalorder %s77, %s78
      %p90 = scmp.eq.s32.totalorder %s26, 1
      %p91 = por %p89, %p90
      %p93 = scmp.ne.s32.totalorder %s78, %s92
      %p94 = scmp.eq.s32.totalorder %s26, 0
      %p95 = por %p93, %p94
      %s97 = sadd.s32 %s96, 1
      %p100 = scmp.eq.s32.totalorder %s20, 1
      %p101 = scmp.ne.s32.totalorder %s96, %s98
      %p102 = scmp.eq.s32.totalorder %s20, 0
      %p103 = por %p101, %p102
      %p104 = scmp.ne.s32.totalorder %s96, %s98
      %p105 = scmp.eq.s32.totalorder %s25, 1
      %p106 = por %p104, %p105
      %p107 = scmp.ne.s32.totalorder %s98, %s99
      %p108 = scmp.eq.s32.totalorder %s25, 0
      %p109 = por %p107, %p108
      %p110 = scmp.ne.s32.totalorder %s98, %s99
      %p111 = scmp.eq.s32.totalorder %s26, 1
      %p112 = por %p110, %p111
      %p114 = scmp.ne.s32.totalorder %s99, %s113
      %p115 = scmp.eq.s32.totalorder %s26, 0
      %p116 = por %p114, %p115
      %s118 = sadd.s32 %s117, 1
      %p121 = scmp.eq.s32.totalorder %s20, 1
      %p122 = scmp.ne.s32.totalorder %s117, %s119
      %p123 = scmp.eq.s32.totalorder %s20, 0
      %p124 = por %p122, %p123
      %p125 = scmp.ne.s32.totalorder %s117, %s119
      %p126 = scmp.eq.s32.totalorder %s25, 1
      %p127 = por %p125, %p126
      %p128 = scmp.ne.s32.totalorder %s119, %s120
      %p129 = scmp.eq.s32.totalorder %s25, 0
      %p130 = por %p128, %p129
      %p131 = scmp.ne.s32.totalorder %s119, %s120
      %p132 = scmp.eq.s32.totalorder %s26, 1
      %p133 = por %p131, %p132
      %p135 = scmp.ne.s32.totalorder %s120, %s134
      %p136 = scmp.eq.s32.totalorder %s26, 0
      %p137 = por %p135, %p136
      %s139 = sadd.s32 %s138, 1
      %p142 = scmp.eq.s32.totalorder %s20, 1
      %p143 = scmp.ne.s32.totalorder %s138, %s140
      %p144 = scmp.eq.s32.totalorder %s20, 0
      %p145 = por %p143, %p144
      %p146 = scmp.ne.s32.totalorder %s138, %s140
      %p147 = scmp.eq.s32.totalorder %s25, 1
      %p148 = por %p146, %p147
      %p149 = scmp.ne.s32.totalorder %s140, %s141
      %p150 = scmp.eq.s32.totalorder %s25, 0
      %p151 = por %p149, %p150
      %p152 = scmp.ne.s32.totalorder %s140, %s141
      %p153 = scmp.eq.s32.totalorder %s26, 1
      %p154 = por %p152, %p153
      %p156 = scmp.ne.s32.totalorder %s141, %s155
      %p157 = scmp.eq.s32.totalorder %s26, 0
      %p158 = por %p156, %p157
      %s160 = sadd.s32 %s159, 1
      %p163 = scmp.eq.s32.totalorder %s20, 1
      %p164 = scmp.ne.s32.totalorder %s159, %s161
      %p165 = scmp.eq.s32.totalorder %s20, 0
      %p166 = por %p164, %p165
      %p167 = scmp.ne.s32.totalorder %s159, %s161
      %p168 = scmp.eq.s32.totalorder %s25, 1
      %p169 = por %p167, %p168
      %p170 = scmp.ne.s32.totalorder %s161, %s162
      %p171 = scmp.eq.s32.totalorder %s25, 0
      %p172 = por %p170, %p171
      %p173 = scmp.ne.s32.totalorder %s161, %s162
      %p174 = scmp.eq.s32.totalorder %s26, 1
      %p175 = por %p173, %p174
      %p177 = scmp.ne.s32.totalorder %s162, %s176
      %p178 = scmp.eq.s32.totalorder %s26, 0
      %p179 = por %p177, %p178
      %s181 = sadd.s32 %s180, 1
      %p184 = scmp.eq.s32.totalorder %s20, 1
      %p185 = scmp.ne.s32.totalorder %s180, %s182
      %p186 = scmp.eq.s32.totalorder %s20, 0
      %p187 = por %p185, %p186
      %p188 = scmp.ne.s32.totalorder %s180, %s182
      %p189 = scmp.eq.s32.totalorder %s25, 1
      %p190 = por %p188, %p189
      %p191 = scmp.ne.s32.totalorder %s182, %s183
      %p192 = scmp.eq.s32.totalorder %s25, 0
      %p193 = por %p191, %p192
      %p194 = scmp.ne.s32.totalorder %s182, %s183
      %p195 = scmp.eq.s32.totalorder %s26, 1
      %p196 = por %p194, %p195
      %p198 = scmp.ne.s32.totalorder %s183, %s197
      %p199 = scmp.eq.s32.totalorder %s26, 0
      %p200 = por %p198, %p199
      %s202 = sadd.s32 %s201, 1
      %p205 = scmp.eq.s32.totalorder %s20, 1
      %p206 = scmp.ne.s32.totalorder %s201, %s203
      %p207 = scmp.eq.s32.totalorder %s20, 0
      %p208 = por %p206, %p207
      %p209 = scmp.ne.s32.totalorder %s201, %s203
      %p210 = scmp.eq.s32.totalorder %s25, 1
      %p211 = por %p209, %p210
      %p212 = scmp.ne.s32.totalorder %s203, %s204
      %p213 = scmp.eq.s32.totalorder %s25, 0
      %p214 = por %p212, %p213
      %p215 = scmp.ne.s32.totalorder %s203, %s204
      %p216 = scmp.eq.s32.totalorder %s26, 1
      %p217 = por %p215, %p216
      %p219 = scmp.ne.s32.totalorder %s204, %s218
      %p220 = scmp.eq.s32.totalorder %s26, 0
      %p221 = por %p219, %p220
      %s222 = ssub.s32 %s20, %s27
      %p223 = scmp.eq.s32.totalorder %s222, 0
      %s225 = sadd.s32 %s224, 1
      %s226 = scalar_select %p223, %s224, %s225
      %p229 = pneg %p223
      %p230 = scmp.eq.s32.totalorder %s20, 1
      %p231 = por %p229, %p230
      %p232 = scmp.ne.s32.totalorder %s224, %s227
      %p233 = scmp.eq.s32.totalorder %s20, 0
      %p234 = por %p232, %p233
      %p235 = scmp.ne.s32.totalorder %s224, %s227
      %p236 = scmp.eq.s32.totalorder %s25, 1
      %p237 = por %p235, %p236
      %p238 = scmp.ne.s32.totalorder %s227, %s228
      %p239 = scmp.eq.s32.totalorder %s25, 0
      %p240 = por %p238, %p239
      %p241 = scmp.ne.s32.totalorder %s227, %s228
      %p242 = scmp.eq.s32.totalorder %s26, 1
      %p243 = por %p241, %p242
      %p245 = scmp.ne.s32.totalorder %s228, %s244
      %p246 = scmp.eq.s32.totalorder %s26, 0
      %p247 = por %p245, %p246
      %p248 = scmp.le.s32.totalorder 1, %s20
      %p249 = scmp.lt.s32.totalorder %s20, 3
      %p250 = pnand %p248, %p249
      %p251 = pneg %p250
      // Predicated region
      $region9: #{tpu_custom_call.1} parent=5 // pred_check
        _
      $region10: #{tpu_custom_call.1} parent=5 // pred_check_branch
        %253 = sbr.rel (%p250) target = $region12
      $region11: #{tpu_custom_call.1} parent=5 // pred_region
        %s254 = ssub.s32 %s20, 1
        // Predicated region
        $region13: #{tpu_custom_call.1} parent=11 // pred_check
          %p255 = pneg %p67
        $region14: #{tpu_custom_call.1} parent=11 // pred_check_branch
          %257 = sbr.rel (%p255) target = $region16
        $region15: #{tpu_custom_call.1} parent=11 // pred_region
          _
        $region16: #{tpu_custom_call.1} parent=11 // pred_fallthru
          _
        // Predicated region
        $region17: #{tpu_custom_call.1} parent=11 // pred_check
          %p258 = pneg %p88
        $region18: #{tpu_custom_call.1} parent=11 // pred_check_branch
          %260 = sbr.rel (%p258) target = $region20
        $region19: #{tpu_custom_call.1} parent=11 // pred_region
          %262 = vsyncadd [#allocation3], 0
          %s263 = sshll.u32 %s2, 4
          %s264 = int_to_ptr.hbm [resolvable:$true] %s263
          %s265 = sshll.u32 [#allocation2], 4
          %s266 = int_to_ptr.vmem [resolvable:$true] %s265
          %271 = dma.hbm_to_vmem [thread:$0]  %s264, 512, %s266, [#allocation3], 128, 128, 8
        $region20: #{tpu_custom_call.1} parent=11 // pred_fallthru
          _
        // Predicated region
        $region21: #{tpu_custom_call.1} parent=11 // pred_check
          %p272 = pneg %p109
        $region22: #{tpu_custom_call.1} parent=11 // pred_check_branch
          %274 = sbr.rel (%p272) target = $region24
        $region23: #{tpu_custom_call.1} parent=11 // pred_region
          _
        $region24: #{tpu_custom_call.1} parent=11 // pred_fallthru
          _
        // Predicated region
        $region25: #{tpu_custom_call.1} parent=11 // pred_check
          %p275 = pneg %p130
        $region26: #{tpu_custom_call.1} parent=11 // pred_check_branch
          %277 = sbr.rel (%p275) target = $region28
        $region27: #{tpu_custom_call.1} parent=11 // pred_region
          _
        $region28: #{tpu_custom_call.1} parent=11 // pred_fallthru
          _
        // Predicated region
        $region29: #{tpu_custom_call.1} parent=11 // pred_check
          %p278 = pneg %p151
        $region30: #{tpu_custom_call.1} parent=11 // pred_check_branch
          %280 = sbr.rel (%p278) target = $region32
        $region31: #{tpu_custom_call.1} parent=11 // pred_region
          _
        $region32: #{tpu_custom_call.1} parent=11 // pred_fallthru
          _
        // Predicated region
        $region33: #{tpu_custom_call.1} parent=11 // pred_check
          %p281 = pneg %p172
        $region34: #{tpu_custom_call.1} parent=11 // pred_check_branch
          %283 = sbr.rel (%p281) target = $region36
        $region35: #{tpu_custom_call.1} parent=11 // pred_region
          _
        $region36: #{tpu_custom_call.1} parent=11 // pred_fallthru
          _
        // Predicated region
        $region37: #{tpu_custom_call.1} parent=11 // pred_check
          %p284 = pneg %p193
        $region38: #{tpu_custom_call.1} parent=11 // pred_check_branch
          %286 = sbr.rel (%p284) target = $region40
        $region39: #{tpu_custom_call.1} parent=11 // pred_region
          %288 = vsyncadd [#allocation6], 0
          %s289 = sshll.u32 %s7, 4
          %s290 = int_to_ptr.hbm [resolvable:$true] %s289
          %s291 = sshll.u32 [#allocation5], 4
          %s292 = int_to_ptr.vmem [resolvable:$true] %s291
          %297 = dma.hbm_to_vmem [thread:$0]  %s290, 512, %s292, [#allocation6], 128, 128, 8
        $region40: #{tpu_custom_call.1} parent=11 // pred_fallthru
          _
        // Predicated region
        $region41: #{tpu_custom_call.1} parent=11 // pred_check
          %p298 = pneg %p214
        $region42: #{tpu_custom_call.1} parent=11 // pred_check_branch
          %300 = sbr.rel (%p298) target = $region44
        $region43: #{tpu_custom_call.1} parent=11 // pred_region
          _
        $region44: #{tpu_custom_call.1} parent=11 // pred_fallthru
          _
      $region12: #{tpu_custom_call.1} parent=5 // pred_fallthru
        _
      %p301 = scmp.lt.s32.totalorder %s20, 2
      // Predicated region
      $region45: #{tpu_custom_call.1} parent=5 // pred_check
        %p302 = pneg %p301
      $region46: #{tpu_custom_call.1} parent=5 // pred_check_branch
        %304 = sbr.rel (%p302) target = $region48
      $region47: #{tpu_custom_call.1} parent=5 // pred_region
        // Predicated region
        $region49: #{tpu_custom_call.1} parent=47 // pred_check
          %p305 = pneg %p40
        $region50: #{tpu_custom_call.1} parent=47 // pred_check_branch
          %307 = sbr.rel (%p305) target = $region52
        $region51: #{tpu_custom_call.1} parent=47 // pred_region
          %p308 = scmp.lt.s32.totalorder %s20, 1
          %s309 = scalar_select %p308, %s20, 1
          %s310 = smul.addr %s309, 8
          %s311 = scalar_lea.vmem %s0, %s310
        $region52: #{tpu_custom_call.1} parent=47 // pred_fallthru
          _
      $region48: #{tpu_custom_call.1} parent=5 // pred_fallthru
        _
      %p312 = scmp.le.s32.totalorder 1, %s20
      %p313 = scmp.lt.s32.totalorder %s20, 3
      %p314 = pnand %p312, %p313
      %p315 = pneg %p314
      // Predicated region
      $region53: #{tpu_custom_call.1} parent=5 // pred_check
        _
      $region54: #{tpu_custom_call.1} parent=5 // pred_check_branch
        %317 = sbr.rel (%p314) target = $region56
      $region55: #{tpu_custom_call.1} parent=5 // pred_region
        %s318 = ssub.s32 %s20, 1
        // Predicated region
        $region57: #{tpu_custom_call.1} parent=55 // pred_check
          %p319 = pneg %p88
        $region58: #{tpu_custom_call.1} parent=55 // pred_check_branch
          %321 = sbr.rel (%p319) target = $region60
        $region59: #{tpu_custom_call.1} parent=55 // pred_region
          %323 = dma.done [#allocation3], 512
        $region60: #{tpu_custom_call.1} parent=55 // pred_fallthru
          _
        // Predicated region
        $region61: #{tpu_custom_call.1} parent=55 // pred_check
          %p324 = pneg %p193
        $region62: #{tpu_custom_call.1} parent=55 // pred_check_branch
          %326 = sbr.rel (%p324) target = $region64
        $region63: #{tpu_custom_call.1} parent=55 // pred_region
          %328 = dma.done [#allocation6], 512
        $region64: #{tpu_custom_call.1} parent=55 // pred_fallthru
          _
        %p329 = scmp.lt.s32.totalorder %s25, 1
        %s330 = scalar_select %p329, %s25, 1
        %s331 = smul.addr %s330, 8
        %s332 = scalar_lea.vmem %s0, %s331
        %p333 = pneg %p46
        %p334 = pneg %p43
        %p335 = pneg %p67
        %p336 = pneg %p64
        %p337 = pneg %p88
        %p338 = pneg %p85
        %p339 = pneg %p109
        %p340 = pneg %p106
        %p341 = pneg %p130
        %p342 = pneg %p127
        %p343 = pneg %p151
        %p344 = pneg %p148
        %p345 = pneg %p172
        %p346 = pneg %p169
        %p347 = pneg %p193
        %p348 = pneg %p190
        %p349 = pneg %p214
        %p350 = pneg %p211
        %p351 = pneg %p240
        %p352 = pneg %p237
        %s353 = sand.u32 %s227, 1
        %s354 = scalar_lea.sflag [#allocation4], %s353
        %s355 = sand.u32 %s227, 1
        %s356 = scalar_lea.vmem [#allocation7], %s355
        %p357 = scmp.lt.s32.totalorder %s25, 1
        %s358 = scalar_select %p357, %s25, 1
        %s359 = smul.addr %s358, 8
        %s360 = scalar_lea.vmem %s0, %s359
        %v361 = vld [vmem:[%s360] sm:$0xff]
        %v362 = vlaneseq
        %v363 = vand.u32 %v362, 127
        %364 = vset.pattern.permute.xlu0 0
        %365 = vperm.xlu0 %364, %v361
        %v366 = vpop.permute.xlu0 %365
        %vm367 = vcmp.eq.s32.totalorder %v366, %v363
        %v368 = vsel %vm367, 1, 0
        %v369 = vcvt.s32.f32 %v368
        %v370 = vld [vmem:[%s1] sm:$0xff]
        %v371 = vld [vmem:[%s1 + $0x8] sm:$0xff]
        %v372 = vld [vmem:[%s1 + $0x10] sm:$0xff]
        %v373 = vld [vmem:[%s1 + $0x18] sm:$0xff]
        %v374 = vld [vmem:[%s1 + $0x20] sm:$0xff]
        %v375 = vld [vmem:[%s1 + $0x28] sm:$0xff]
        %v376 = vld [vmem:[%s1 + $0x30] sm:$0xff]
        %v377 = vld [vmem:[%s1 + $0x38] sm:$0xff]
        %v378 = vld [vmem:[%s1 + $0x40] sm:$0xff]
        %v379 = vld [vmem:[%s1 + $0x48] sm:$0xff]
        %v380 = vld [vmem:[%s1 + $0x50] sm:$0xff]
        %v381 = vld [vmem:[%s1 + $0x58] sm:$0xff]
        %v382 = vld [vmem:[%s1 + $0x60] sm:$0xf]
        %vm383 = vcmask 818176
        %v385 = vsel %vm383, %v369, 0
        %vm387 = vcmask 1043456
        %v389 = vsel %vm387, %v382, 0
        %391 = vmatpush.msra.mxu0 0.0
        %392 = vmatpush.msra.mxu0 0.0
        %393 = vmatpush.msra.mxu0 0.0
        %394 = vmatpush.msra.mxu0 %v389
        %395 = vmatpush.msra.mxu0 %v381
        %396 = vmatpush.msra.mxu0 %v380
        %397 = vmatpush.msra.mxu0 %v379
        %398 = vmatpush.msra.mxu0 %v378
        %399 = vmatpush.msra.mxu0 %v377
        %400 = vmatpush.msra.mxu0 %v376
        %401 = vmatpush.msra.mxu0 %v375
        %402 = vmatpush.msra.mxu0 %v374
        %403 = vmatpush.msra.mxu0 %v373
        %404 = vmatpush.msra.mxu0 %v372
        %405 = vmatpush.msra.mxu0 %v371
        %406 = vmatpush.msra.mxu0 %v370
        %407 = vmatmul.f32.gmra.mxu0 %v385
        %v408 = vpop.f32.mrf.mxu0
        %v409 = vadd.f32 0.0, %v408
        %410 = vdwg.mxu0
        %v411 = vld [vmem:[%s3] sm:$0x1]
        %v412 = vld [vmem:[%s3 + $0x1] sm:$0x1]
        %v413 = vld [vmem:[#allocation2] sm:$0xff]
        %v414 = vld [vmem:[#allocation2 + $0x8] sm:$0xff]
        %v415 = vld [vmem:[#allocation2 + $0x10] sm:$0xff]
        %v416 = vld [vmem:[#allocation2 + $0x18] sm:$0xff]
        %v417 = vperm.slane %v411, 0
        %vm418 = vcmask 261120
        %v420 = vsel %vm418, %v409, 0
        %422 = vmatpush.msra.mxu0 0.0
        %423 = vmatpush.msra.mxu0 0.0
        %424 = vmatpush.msra.mxu0 0.0
        %425 = vmatpush.msra.mxu0 0.0
        %426 = vmatpush.msra.mxu0 0.0
        %427 = vmatpush.msra.mxu0 0.0
        %428 = vmatpush.msra.mxu0 0.0
        %429 = vmatpush.msra.mxu0 0.0
        %430 = vmatpush.msra.mxu0 0.0
        %431 = vmatpush.msra.mxu0 0.0
        %432 = vmatpush.msra.mxu0 0.0
        %433 = vmatpush.msra.mxu0 0.0
        %434 = vmatpush.msra.mxu0 %v416
        %435 = vmatpush.msra.mxu0 %v415
        %436 = vmatpush.msra.mxu0 %v414
        %437 = vmatpush.msra.mxu0 %v413
        %438 = vmatmul.f32.gmra.mxu0 %v420
        %v439 = vpop.f32.mrf.mxu0
        %v440 = vadd.f32 %v417, %v439
        %441 = vdwg.mxu0
        %v442 = vld [vmem:[%s4] sm:$0xff]
        %v443 = vld [vmem:[%s4 + $0x8] sm:$0x1]
        %v444 = vadd.f32 %v440, %v442
        %v445 = vadd.f32 %v412, %v443
        %v446 = vlaneseq
        %v447 = vshrl.u32 %v446, 7
        %v448 = vadd.s32 %v447, 8
        %v449 = vadd.s32 %v447, 16
        %v450 = vadd.s32 %v447, 24
        %v451 = vadd.s32 %v447, 32
        %vm452 = vcmp.ge.s32.totalorder %v447, 9
        %vm453 = vcmp.ge.s32.totalorder %v448, 9
        %vm454 = vcmp.ge.s32.totalorder %v449, 9
        %vm455 = vcmp.ge.s32.totalorder %v450, 9
        %vm456 = vcmp.ge.s32.totalorder %v451, 9
        %v457 = vsel %vm452, 1, 0
        %v458 = vsel %vm453, 1, 0
        %v459 = vsel %vm454, 1, 0
        %v460 = vsel %vm455, 1, 0
        %v461 = vsel %vm456, 1, 0
        %vm462 = vcmp.ge.s32.totalorder %v447, 18
        %vm463 = vcmp.ge.s32.totalorder %v448, 18
        %vm464 = vcmp.ge.s32.totalorder %v449, 18
        %vm465 = vcmp.ge.s32.totalorder %v450, 18
        %vm466 = vcmp.ge.s32.totalorder %v451, 18
        %v467 = vsel %vm462, 1, 0
        %v468 = vsel %vm463, 1, 0
        %v469 = vsel %vm464, 1, 0
        %v470 = vsel %vm465, 1, 0
        %v471 = vsel %vm466, 1, 0
        %v472 = vadd.s32 %v457, %v467
        %v473 = vadd.s32 %v458, %v468
        %v474 = vadd.s32 %v459, %v469
        %v475 = vadd.s32 %v460, %v470
        %v476 = vadd.s32 %v461, %v471
        %vm477 = vcmp.ge.s32.totalorder %v447, 27
        %vm478 = vcmp.ge.s32.totalorder %v448, 27
        %vm479 = vcmp.ge.s32.totalorder %v449, 27
        %vm480 = vcmp.ge.s32.totalorder %v450, 27
        %vm481 = vcmp.ge.s32.totalorder %v451, 27
        %v482 = vsel %vm477, 1, 0
        %v483 = vsel %vm478, 1, 0
        %v484 = vsel %vm479, 1, 0
        %v485 = vsel %vm480, 1, 0
        %v486 = vsel %vm481, 1, 0
        %v487 = vadd.s32 %v472, %v482
        %v488 = vadd.s32 %v473, %v483
        %v489 = vadd.s32 %v474, %v484
        %v490 = vadd.s32 %v475, %v485
        %v491 = vadd.s32 %v476, %v486
        %vm492 = vcmp.ge.s32.totalorder %v363, 8
        %v493 = vsel %vm492, 1, 0
        %vm494 = vcmp.ge.s32.totalorder %v363, 16
        %v495 = vsel %vm494, 1, 0
        %v496 = vadd.s32 %v493, %v495
        %vm497 = vcmp.ge.s32.totalorder %v363, 24
        %v498 = vsel %vm497, 1, 0
        %v499 = vadd.s32 %v496, %v498
        %vm500 = vcmp.eq.s32.totalorder %v487, %v499
        %vm501 = vcmp.eq.s32.totalorder %v488, %v499
        %vm502 = vcmp.eq.s32.totalorder %v489, %v499
        %vm503 = vcmp.eq.s32.totalorder %v490, %v499
        %vm504 = vcmp.eq.s32.totalorder %v491, %v499
        %v505 = vsel %vm500, 1, 0
        %v506 = vsel %vm501, 1, 0
        %v507 = vsel %vm502, 1, 0
        %v508 = vsel %vm503, 1, 0
        %v509 = vsel %vm504, 1, 0
        %v510 = vcvt.s32.f32 %v505
        %v511 = vcvt.s32.f32 %v506
        %v512 = vcvt.s32.f32 %v507
        %v513 = vcvt.s32.f32 %v508
        %v514 = vcvt.s32.f32 %v509
        %vm515 = vcmp.eq.s32.totalorder %v447, %v363
        %vm516 = vcmp.eq.s32.totalorder %v448, %v363
        %vm517 = vcmp.eq.s32.totalorder %v449, %v363
        %vm518 = vcmp.eq.s32.totalorder %v450, %v363
        %vm519 = vcmp.eq.s32.totalorder %v451, %v363
        %v520 = vsel %vm515, 1, 0
        %v521 = vsel %vm516, 1, 0
        %v522 = vsel %vm517, 1, 0
        %v523 = vsel %vm518, 1, 0
        %v524 = vsel %vm519, 1, 0
        %v525 = vcvt.s32.f32 %v520
        %v526 = vcvt.s32.f32 %v521
        %v527 = vcvt.s32.f32 %v522
        %v528 = vcvt.s32.f32 %v523
        %v529 = vcvt.s32.f32 %v524
        %v530 = vadd.f32 %v525, 0.0
        %v531 = vadd.f32 %v526, 0.0
        %v532 = vadd.f32 %v527, 0.0
        %v533 = vadd.f32 %v528, 0.0
        %v534 = vadd.f32 %v529, 0.0
        %v535 = vadd.s32 %v363, 9
        %vm536 = vcmp.eq.s32.totalorder %v447, %v535
        %vm537 = vcmp.eq.s32.totalorder %v448, %v535
        %vm538 = vcmp.eq.s32.totalorder %v449, %v535
        %vm539 = vcmp.eq.s32.totalorder %v450, %v535
        %vm540 = vcmp.eq.s32.totalorder %v451, %v535
        %v541 = vsel %vm536, 1, 0
        %v542 = vsel %vm537, 1, 0
        %v543 = vsel %vm538, 1, 0
        %v544 = vsel %vm539, 1, 0
        %v545 = vsel %vm540, 1, 0
        %v546 = vcvt.s32.f32 %v541
        %v547 = vcvt.s32.f32 %v542
        %v548 = vcvt.s32.f32 %v543
        %v549 = vcvt.s32.f32 %v544
        %v550 = vcvt.s32.f32 %v545
        %v551 = vadd.f32 %v530, %v546
        %v552 = vadd.f32 %v531, %v547
        %v553 = vadd.f32 %v532, %v548
        %v554 = vadd.f32 %v533, %v549
        %v555 = vadd.f32 %v534, %v550
        %v556 = vadd.s32 %v363, 18
        %vm557 = vcmp.eq.s32.totalorder %v447, %v556
        %vm558 = vcmp.eq.s32.totalorder %v448, %v556
        %vm559 = vcmp.eq.s32.totalorder %v449, %v556
        %vm560 = vcmp.eq.s32.totalorder %v450, %v556
        %vm561 = vcmp.eq.s32.totalorder %v451, %v556
        %v562 = vsel %vm557, 1, 0
        %v563 = vsel %vm558, 1, 0
        %v564 = vsel %vm559, 1, 0
        %v565 = vsel %vm560, 1, 0
        %v566 = vsel %vm561, 1, 0
        %v567 = vcvt.s32.f32 %v562
        %v568 = vcvt.s32.f32 %v563
        %v569 = vcvt.s32.f32 %v564
        %v570 = vcvt.s32.f32 %v565
        %v571 = vcvt.s32.f32 %v566
        %v572 = vadd.f32 %v551, %v567
        %v573 = vadd.f32 %v552, %v568
        %v574 = vadd.f32 %v553, %v569
        %v575 = vadd.f32 %v554, %v570
        %v576 = vadd.f32 %v555, %v571
        %v577 = vadd.s32 %v363, 27
        %vm578 = vcmp.eq.s32.totalorder %v447, %v577
        %vm579 = vcmp.eq.s32.totalorder %v448, %v577
        %vm580 = vcmp.eq.s32.totalorder %v449, %v577
        %vm581 = vcmp.eq.s32.totalorder %v450, %v577
        %vm582 = vcmp.eq.s32.totalorder %v451, %v577
        %v583 = vsel %vm578, 1, 0
        %v584 = vsel %vm579, 1, 0
        %v585 = vsel %vm580, 1, 0
        %v586 = vsel %vm581, 1, 0
        %v587 = vsel %vm582, 1, 0
        %v588 = vcvt.s32.f32 %v583
        %v589 = vcvt.s32.f32 %v584
        %v590 = vcvt.s32.f32 %v585
        %v591 = vcvt.s32.f32 %v586
        %v592 = vcvt.s32.f32 %v587
        %v593 = vadd.f32 %v572, %v588
        %v594 = vadd.f32 %v573, %v589
        %v595 = vadd.f32 %v574, %v590
        %v596 = vadd.f32 %v575, %v591
        %v597 = vadd.f32 %v576, %v592
        %vm598 = vcmp.eq.s32.totalorder %v363, %v447
        %vm599 = vcmp.eq.s32.totalorder %v363, %v448
        %v600 = vsel %vm598, 1, 0
        %v601 = vsel %vm599, 1, 0
        %v602 = vcvt.s32.f32 %v600
        %v603 = vcvt.s32.f32 %v601
        %v604 = vadd.f32 %v602, 0.0
        %v605 = vadd.f32 %v603, 0.0
        %v606 = vadd.s32 %v447, 9
        %v607 = vadd.s32 %v448, 9
        %vm608 = vcmp.eq.s32.totalorder %v363, %v606
        %vm609 = vcmp.eq.s32.totalorder %v363, %v607
        %v610 = vsel %vm608, 1, 0
        %v611 = vsel %vm609, 1, 0
        %v612 = vcvt.s32.f32 %v610
        %v613 = vcvt.s32.f32 %v611
        %v614 = vadd.f32 %v604, %v612
        %v615 = vadd.f32 %v605, %v613
        %v616 = vadd.s32 %v447, 18
        %v617 = vadd.s32 %v448, 18
        %vm618 = vcmp.eq.s32.totalorder %v363, %v616
        %vm619 = vcmp.eq.s32.totalorder %v363, %v617
        %v620 = vsel %vm618, 1, 0
        %v621 = vsel %vm619, 1, 0
        %v622 = vcvt.s32.f32 %v620
        %v623 = vcvt.s32.f32 %v621
        %v624 = vadd.f32 %v614, %v622
        %v625 = vadd.f32 %v615, %v623
        %v626 = vadd.s32 %v447, 27
        %v627 = vadd.s32 %v448, 27
        %vm628 = vcmp.eq.s32.totalorder %v363, %v626
        %vm629 = vcmp.eq.s32.totalorder %v363, %v627
        %v630 = vsel %vm628, 1, 0
        %v631 = vsel %vm629, 1, 0
        %v632 = vcvt.s32.f32 %v630
        %v633 = vcvt.s32.f32 %v631
        %v634 = vadd.f32 %v624, %v632
        %v635 = vadd.f32 %v625, %v633
        %v636 = vld [vmem:[%s5] sm:$0xff]
        %v637 = vld [vmem:[%s5 + $0x8] sm:$0xff]
        %v638 = vld [vmem:[%s5 + $0x10] sm:$0xff]
        %v639 = vld [vmem:[%s5 + $0x18] sm:$0xff]
        %v640 = vld [vmem:[%s5 + $0x20] sm:$0xff]
        %v641 = vld [vmem:[%s5 + $0x28] sm:$0xff]
        %v642 = vld [vmem:[%s5 + $0x30] sm:$0xff]
        %v643 = vld [vmem:[%s5 + $0x38] sm:$0xff]
        %v644 = vld [vmem:[%s6] sm:$0xff]
        %v645 = vld [vmem:[%s6 + $0x8] sm:$0x3]
        %v647 = vsel %vm418, %v444, 0
        %v650 = vsel %vm418, %v445, 0
        %652 = vmatpush.msra.mxu0 0.0
        %653 = vmatpush.msra.mxu0 0.0
        %654 = vmatpush.msra.mxu0 0.0
        %655 = vmatpush.msra.mxu0 0.0
        %656 = vmatpush.msra.mxu0 0.0
        %657 = vmatpush.msra.mxu0 0.0
        %658 = vmatpush.msra.mxu0 0.0
        %659 = vmatpush.msra.mxu0 0.0
        %660 = vmatpush.msra.mxu0 0.0
        %661 = vmatpush.msra.mxu0 0.0
        %662 = vmatpush.msra.mxu0 0.0
        %663 = vmatpush.msra.mxu0 0.0
        %664 = vmatpush.msra.mxu0 %v642
        %665 = vmatpush.msra.mxu0 %v640
        %666 = vmatpush.msra.mxu0 %v638
        %667 = vmatpush.msra.mxu0 %v636
        %668 = vmatmul.f32.gmra.mxu0 %v647
        %v669 = vpop.f32.mrf.mxu0
        %v670 = vadd.f32 0.0, %v669
        %671 = vmatmul.f32.gmra.mxu0 %v650
        %v672 = vpop.f32.mrf.mxu0
        %v673 = vadd.f32 0.0, %v672
        %674 = vdwg.mxu0
        %v675 = vperm.slane %v644, 0
        %v676 = vadd.f32 %v670, %v675
        %v677 = vadd.f32 %v673, %v675
        %v678 = vmul.f32 %v676, 0.35355338
        %v679 = vmul.f32 %v677, 0.35355338
        %v680 = vperm.slane %v644, 1
        %682 = vrot.lane.b32.xlu0 %v680, 32
        %v683 = vpop.permute.xlu0 %682
        %v685 = vadd.f32 %v670, %v683
        %v686 = vadd.f32 %v673, %v683
        %v687 = vperm.slane %v644, 2
        %689 = vrot.lane.b32.xlu0 %v687, 64
        %v690 = vpop.permute.xlu0 %689
        %v692 = vadd.f32 %v670, %v690
        %v693 = vadd.f32 %v673, %v690
        %vm694 = vcmask 72704
        %v696 = vsel %vm694, %v593, 0
        %v699 = vsel %vm694, %v594, 0
        %v702 = vsel %vm694, %v595, 0
        %v705 = vsel %vm694, %v596, 0
        %v708 = vsel %vm694, %v597, 0
        %vm710 = vcmask 1040384
        %v712 = vsel %vm710, %v679, 0
        %714 = vmatpush.msra.mxu0 0.0
        %715 = vmatpush.msra.mxu0 0.0
        %716 = vmatpush.msra.mxu0 0.0
        %717 = vmatpush.msra.mxu0 0.0
        %718 = vmatpush.msra.mxu0 0.0
        %719 = vmatpush.msra.mxu0 0.0
        %720 = vmatpush.msra.mxu0 0.0
        %721 = vmatpush.msra.mxu0 0.0
        %722 = vmatpush.msra.mxu0 0.0
        %723 = vmatpush.msra.mxu0 0.0
        %724 = vmatpush.msra.mxu0 0.0
        %725 = vmatpush.msra.mxu0 0.0
        %726 = vmatpush.msra.mxu0 0.0
        %727 = vmatpush.msra.mxu0 0.0
        %728 = vmatpush.msra.mxu0 %v712
        %729 = vmatpush.msra.mxu0 %v678
        %730 = vmatmul.f32.gmra.mxu0 %v696
        %v731 = vpop.f32.mrf.mxu0
        %v732 = vadd.f32 0.0, %v731
        %733 = vmatmul.f32.gmra.mxu0 %v699
        %v734 = vpop.f32.mrf.mxu0
        %v735 = vadd.f32 0.0, %v734
        %736 = vmatmul.f32.gmra.mxu0 %v702
        %v737 = vpop.f32.mrf.mxu0
        %v738 = vadd.f32 0.0, %v737
        %739 = vmatmul.f32.gmra.mxu0 %v705
        %v740 = vpop.f32.mrf.mxu0
        %v741 = vadd.f32 0.0, %v740
        %742 = vmatmul.f32.gmra.mxu0 %v708
        %v743 = vpop.f32.mrf.mxu0
        %v744 = vadd.f32 0.0, %v743
        %745 = vdwg.mxu0
        %v746 = vmul.f32 %v732, %v510
        %v747 = vmul.f32 %v735, %v511
        %v748 = vmul.f32 %v738, %v512
        %v749 = vmul.f32 %v741, %v513
        %v750 = vmul.f32 %v744, %v514
        %753 = vrot.lane.b32.xlu0 %v685, 96
        %v754 = vpop.permute.xlu0 %753
        %755 = vrot.lane.b32.xlu0 %v686, 96
        %v756 = vpop.permute.xlu0 %755
        %v758 = vsel %vm418, %v746, 0
        %v761 = vsel %vm418, %v747, 0
        %v764 = vsel %vm418, %v748, 0
        %v767 = vsel %vm418, %v749, 0
        %v770 = vsel %vm418, %v750, 0
        %v772 = vsel %vm418, %v754, 0
        %v774 = vsel %vm418, %v756, 0
        %776 = vmatpush.xpose.msra.mxu0 0.0
        %777 = vmatpush.xpose.msra.mxu0 0.0
        %778 = vmatpush.xpose.msra.mxu0 0.0
        %779 = vmatpush.xpose.msra.mxu0 0.0
        %780 = vmatpush.xpose.msra.mxu0 0.0
        %781 = vmatpush.xpose.msra.mxu0 0.0
        %782 = vmatpush.xpose.msra.mxu0 0.0
        %783 = vmatpush.xpose.msra.mxu0 0.0
        %784 = vmatpush.xpose.msra.mxu0 0.0
        %785 = vmatpush.xpose.msra.mxu0 0.0
        %786 = vmatpush.xpose.msra.mxu0 0.0
        %787 = vmatpush.xpose.msra.mxu0 0.0
        %788 = vmatpush.xpose.msra.mxu0 0.0
        %789 = vmatpush.xpose.msra.mxu0 0.0
        %790 = vmatpush.xpose.msra.mxu0 %v774
        %791 = vmatpush.xpose.msra.mxu0 %v772
        %792 = vmatmul.f32.gmra.mxu0 %v758
        %v793 = vpop.f32.mrf.mxu0
        %v794 = vadd.f32 0.0, %v793
        %795 = vmatmul.f32.gmra.mxu0 %v761
        %v796 = vpop.f32.mrf.mxu0
        %v797 = vadd.f32 0.0, %v796
        %798 = vmatmul.f32.gmra.mxu0 %v764
        %v799 = vpop.f32.mrf.mxu0
        %v800 = vadd.f32 0.0, %v799
        %801 = vmatmul.f32.gmra.mxu0 %v767
        %v802 = vpop.f32.mrf.mxu0
        %v803 = vadd.f32 0.0, %v802
        %804 = vmatmul.f32.gmra.mxu0 %v770
        %v805 = vpop.f32.mrf.mxu0
        %v806 = vadd.f32 0.0, %v805
        %807 = vdwg.mxu0
        %v808 = vsel %vm694, %v794, -inf
        %809 = vmax.xlane.f32.xlu0 %v808
        %v810 = vpop.xlane.xlu0 %809
        %v811 = vsel %vm694, %v797, -inf
        %812 = vmax.xlane.f32.xlu0 %v811
        %v813 = vpop.xlane.xlu0 %812
        %v814 = vsel %vm694, %v800, -inf
        %815 = vmax.xlane.f32.xlu0 %v814
        %v816 = vpop.xlane.xlu0 %815
        %v817 = vsel %vm694, %v803, -inf
        %818 = vmax.xlane.f32.xlu0 %v817
        %v819 = vpop.xlane.xlu0 %818
        %vm820 = vcmask 68608
        %v821 = vsel %vm820, %v806, -inf
        %822 = vmax.xlane.f32.xlu0 %v821
        %v823 = vpop.xlane.xlu0 %822
        %v824 = vsub.f32 %v794, %v810
        %v825 = vsub.f32 %v797, %v813
        %v826 = vsub.f32 %v800, %v816
        %v827 = vsub.f32 %v803, %v819
        %v828 = vsub.f32 %v806, %v823
        %v829 = vmul.f32 %v824, 1.442695
        %v830 = vpow.pop %v829
        %v831 = vmul.f32 %v825, 1.442695
        %v832 = vpow.pop %v831
        %v833 = vmul.f32 %v826, 1.442695
        %v834 = vpow.pop %v833
        %v835 = vmul.f32 %v827, 1.442695
        %v836 = vpow.pop %v835
        %v837 = vmul.f32 %v828, 1.442695
        %v838 = vpow.pop %v837
        %v839 = vsel %vm694, %v830, 0.0
        %840 = vadd.xlane.f32.xlu0 %v839
        %v841 = vpop.xlane.xlu0 %840
        %v842 = vsel %vm694, %v832, 0.0
        %843 = vadd.xlane.f32.xlu0 %v842
        %v844 = vpop.xlane.xlu0 %843
        %v845 = vsel %vm694, %v834, 0.0
        %846 = vadd.xlane.f32.xlu0 %v845
        %v847 = vpop.xlane.xlu0 %846
        %v848 = vsel %vm694, %v836, 0.0
        %849 = vadd.xlane.f32.xlu0 %v848
        %v850 = vpop.xlane.xlu0 %849
        %v851 = vsel %vm820, %v838, 0.0
        %852 = vadd.xlane.f32.xlu0 %v851
        %v853 = vpop.xlane.xlu0 %852
        %v854 = vrcp.pop %v841
        %v855 = vrcp.pop %v844
        %v856 = vrcp.pop %v847
        %v857 = vrcp.pop %v850
        %v858 = vrcp.pop %v853
        %v859 = vmul.f32 %v841, %v854
        %v860 = vmul.f32 %v844, %v855
        %v861 = vmul.f32 %v847, %v856
        %v862 = vmul.f32 %v850, %v857
        %v863 = vmul.f32 %v853, %v858
        %v864 = vsub.f32 2.0, %v859
        %v865 = vsub.f32 2.0, %v860
        %v866 = vsub.f32 2.0, %v861
        %v867 = vsub.f32 2.0, %v862
        %v868 = vsub.f32 2.0, %v863
        %v869 = vmul.f32 %v854, %v864
        %v870 = vmul.f32 %v855, %v865
        %v871 = vmul.f32 %v856, %v866
        %v872 = vmul.f32 %v857, %v867
        %v873 = vmul.f32 %v858, %v868
        %v874 = vmul.f32 %v830, %v869
        %v875 = vmul.f32 %v832, %v870
        %v876 = vmul.f32 %v834, %v871
        %v877 = vmul.f32 %v836, %v872
        %v878 = vmul.f32 %v838, %v873
        %881 = vrot.lane.b32.xlu0 %v692, 64
        %v882 = vpop.permute.xlu0 %881
        %883 = vrot.lane.b32.xlu0 %v693, 64
        %v884 = vpop.permute.xlu0 %883
        %v887 = vsel %vm694, %v874, 0
        %v890 = vsel %vm694, %v875, 0
        %v893 = vsel %vm694, %v876, 0
        %v896 = vsel %vm694, %v877, 0
        %v899 = vsel %vm694, %v878, 0
        %v901 = vsel %vm710, %v884, 0
        %903 = vmatpush.msra.mxu0 0.0
        %904 = vmatpush.msra.mxu0 0.0
        %905 = vmatpush.msra.mxu0 0.0
        %906 = vmatpush.msra.mxu0 0.0
        %907 = vmatpush.msra.mxu0 0.0
        %908 = vmatpush.msra.mxu0 0.0
        %909 = vmatpush.msra.mxu0 0.0
        %910 = vmatpush.msra.mxu0 0.0
        %911 = vmatpush.msra.mxu0 0.0
        %912 = vmatpush.msra.mxu0 0.0
        %913 = vmatpush.msra.mxu0 0.0
        %914 = vmatpush.msra.mxu0 0.0
        %915 = vmatpush.msra.mxu0 0.0
        %916 = vmatpush.msra.mxu0 0.0
        %917 = vmatpush.msra.mxu0 %v901
        %918 = vmatpush.msra.mxu0 %v882
        %919 = vmatmul.f32.gmra.mxu0 %v887
        %v920 = vpop.f32.mrf.mxu0
        %v921 = vadd.f32 0.0, %v920
        %922 = vmatmul.f32.gmra.mxu0 %v890
        %v923 = vpop.f32.mrf.mxu0
        %v924 = vadd.f32 0.0, %v923
        %925 = vmatmul.f32.gmra.mxu0 %v893
        %v926 = vpop.f32.mrf.mxu0
        %v927 = vadd.f32 0.0, %v926
        %928 = vmatmul.f32.gmra.mxu0 %v896
        %v929 = vpop.f32.mrf.mxu0
        %v930 = vadd.f32 0.0, %v929
        %931 = vmatmul.f32.gmra.mxu0 %v899
        %v932 = vpop.f32.mrf.mxu0
        %v933 = vadd.f32 0.0, %v932
        %934 = vdwg.mxu0
        %v935 = vmul.f32 %v921, %v510
        %v936 = vmul.f32 %v924, %v511
        %v937 = vmul.f32 %v927, %v512
        %v938 = vmul.f32 %v930, %v513
        %v939 = vmul.f32 %v933, %v514
        %vm940 = vcmask 293888
        %v942 = vsel %vm940, %v634, 0
        %v945 = vsel %vm940, %v635, 0
        %v948 = vsel %vm387, %v939, 0
        %950 = vmatpush.msra.mxu0 0.0
        %951 = vmatpush.msra.mxu0 0.0
        %952 = vmatpush.msra.mxu0 0.0
        %953 = vmatpush.msra.mxu0 0.0
        %954 = vmatpush.msra.mxu0 0.0
        %955 = vmatpush.msra.mxu0 0.0
        %956 = vmatpush.msra.mxu0 0.0
        %957 = vmatpush.msra.mxu0 0.0
        %958 = vmatpush.msra.mxu0 0.0
        %959 = vmatpush.msra.mxu0 0.0
        %960 = vmatpush.msra.mxu0 0.0
        %961 = vmatpush.msra.mxu0 %v948
        %962 = vmatpush.msra.mxu0 %v938
        %963 = vmatpush.msra.mxu0 %v937
        %964 = vmatpush.msra.mxu0 %v936
        %965 = vmatpush.msra.mxu0 %v935
        %966 = vmatmul.f32.gmra.mxu0 %v942
        %v967 = vpop.f32.mrf.mxu0
        %v968 = vadd.f32 0.0, %v967
        %969 = vmatmul.f32.gmra.mxu0 %v945
        %v970 = vpop.f32.mrf.mxu0
        %v971 = vadd.f32 0.0, %v970
        %972 = vdwg.mxu0
        %v973 = vperm.slane %v644, 3
        %978 = vrot.lane.b32.xlu0 %v636, 32
        %v979 = vpop.permute.xlu0 %978
        %980 = vrot.lane.b32.xlu0 %v638, 32
        %v981 = vpop.permute.xlu0 %980
        %982 = vrot.lane.b32.xlu0 %v640, 32
        %v983 = vpop.permute.xlu0 %982
        %984 = vrot.lane.b32.xlu0 %v642, 32
        %v985 = vpop.permute.xlu0 %984
        %v991 = vsel %vm418, %v968, 0
        %v994 = vsel %vm418, %v971, 0
        %996 = vmatpush.msra.mxu0 0.0
        %997 = vmatpush.msra.mxu0 0.0
        %998 = vmatpush.msra.mxu0 0.0
        %999 = vmatpush.msra.mxu0 0.0
        %1000 = vmatpush.msra.mxu0 0.0
        %1001 = vmatpush.msra.mxu0 0.0
        %1002 = vmatpush.msra.mxu0 0.0
        %1003 = vmatpush.msra.mxu0 0.0
        %1004 = vmatpush.msra.mxu0 0.0
        %1005 = vmatpush.msra.mxu0 0.0
        %1006 = vmatpush.msra.mxu0 0.0
        %1007 = vmatpush.msra.mxu0 0.0
        %1008 = vmatpush.msra.mxu0 %v985
        %1009 = vmatpush.msra.mxu0 %v983
        %1010 = vmatpush.msra.mxu0 %v981
        %1011 = vmatpush.msra.mxu0 %v979
        %1012 = vmatmul.f32.gmra.mxu0 %v991
        %v1013 = vpop.f32.mrf.mxu0
        %v1014 = vadd.f32 %v973, %v1013
        %1015 = vmatmul.f32.gmra.mxu0 %v994
        %v1016 = vpop.f32.mrf.mxu0
        %v1017 = vadd.f32 %v973, %v1016
        %1018 = vdwg.mxu0
        %v1019 = vadd.f32 %v444, %v1014
        %v1020 = vadd.f32 %v445, %v1017
        %v1021 = vsel %vm418, %v1019, 0.0
        %1022 = vadd.xlane.f32.xlu0 %v1021
        %v1023 = vpop.xlane.xlu0 %1022
        %vm1024 = vcmask 253952
        %v1025 = vsel %vm1024, %v1020, 0.0
        %1026 = vadd.xlane.f32.xlu0 %v1025
        %v1027 = vpop.xlane.xlu0 %1026
        %v1028 = vrcp.pop 32.0
        %v1029 = vmul.f32 32.0, %v1028
        %v1030 = vsub.f32 1.0, %v1029
        %v1031 = vmul.f32 %v1028, %v1030
        %v1032 = vadd.f32 %v1028, %v1031
        %vm1033 = vweird.f32 %v1028
        %v1034 = vsel %vm1033, %v1028, %v1032
        %v1035 = vmul.f32 %v1023, %v1034
        %v1036 = vmul.f32 %v1027, %v1034
        %v1037 = vsub.f32 %v1019, %v1035
        %v1038 = vsub.f32 %v1020, %v1036
        %v1039 = vmul.f32 %v1037, %v1037
        %v1040 = vmul.f32 %v1038, %v1038
        %v1041 = vsel %vm418, %v1039, 0.0
        %1042 = vadd.xlane.f32.xlu0 %v1041
        %v1043 = vpop.xlane.xlu0 %1042
        %v1044 = vsel %vm1024, %v1040, 0.0
        %1045 = vadd.xlane.f32.xlu0 %v1044
        %v1046 = vpop.xlane.xlu0 %1045
        %v1047 = vmul.f32 %v1043, %v1034
        %v1048 = vmul.f32 %v1046, %v1034
        %v1049 = vadd.f32 %v1047, 1e-05
        %v1050 = vadd.f32 %v1048, 1e-05
        %v1051 = vrsqrt.pop %v1049
        %v1052 = vmul.f32 %v1051, %v1049
        %v1053 = vmul.f32 %v1052, %v1051
        %v1054 = vmul.f32 0.5, %v1053
        %v1055 = vsub.f32 1.5, %v1054
        %v1056 = vmul.f32 %v1051, %v1055
        %vm1057 = vweird.f32 %v1049
        %vm1058 = vweird.f32 %v1051
        %vm1059 = vmor %vm1057, %vm1058
        %v1060 = vsel %vm1059, %v1051, %v1056
        %v1061 = vrsqrt.pop %v1050
        %v1062 = vmul.f32 %v1061, %v1050
        %v1063 = vmul.f32 %v1062, %v1061
        %v1064 = vmul.f32 0.5, %v1063
        %v1065 = vsub.f32 1.5, %v1064
        %v1066 = vmul.f32 %v1061, %v1065
        %vm1067 = vweird.f32 %v1050
        %vm1068 = vweird.f32 %v1061
        %vm1069 = vmor %vm1067, %vm1068
        %v1070 = vsel %vm1069, %v1061, %v1066
        %v1071 = vmul.f32 %v1037, %v1060
        %v1072 = vmul.f32 %v1038, %v1070
        %v1073 = vperm.slane %v644, 4
        %v1074 = vmul.f32 %v1071, %v1073
        %v1075 = vmul.f32 %v1072, %v1073
        %v1076 = vperm.slane %v644, 5
        %v1077 = vadd.f32 %v1074, %v1076
        %v1078 = vadd.f32 %v1075, %v1076
        %v1079 = vperm.slane %v644, 6
        %v1081 = vsel %vm418, %v1077, 0
        %v1084 = vsel %vm418, %v1078, 0
        %1086 = vmatpush.msra.mxu0 0.0
        %1087 = vmatpush.msra.mxu0 0.0
        %1088 = vmatpush.msra.mxu0 0.0
        %1089 = vmatpush.msra.mxu0 0.0
        %1090 = vmatpush.msra.mxu0 0.0
        %1091 = vmatpush.msra.mxu0 0.0
        %1092 = vmatpush.msra.mxu0 0.0
        %1093 = vmatpush.msra.mxu0 0.0
        %1094 = vmatpush.msra.mxu0 0.0
        %1095 = vmatpush.msra.mxu0 0.0
        %1096 = vmatpush.msra.mxu0 0.0
        %1097 = vmatpush.msra.mxu0 0.0
        %1098 = vmatpush.msra.mxu0 %v643
        %1099 = vmatpush.msra.mxu0 %v641
        %1100 = vmatpush.msra.mxu0 %v639
        %1101 = vmatpush.msra.mxu0 %v637
        %1102 = vmatmul.f32.gmra.mxu0 %v1081
        %v1103 = vpop.f32.mrf.mxu0
        %v1104 = vadd.f32 %v1079, %v1103
        %1105 = vmatmul.f32.gmra.mxu0 %v1084
        %v1106 = vpop.f32.mrf.mxu0
        %v1107 = vadd.f32 %v1079, %v1106
        %1108 = vdwg.mxu0
        %v1109 = vmul.f32 %v1104, 0.5
        %v1110 = vmul.f32 %v1107, 0.5
        %v1111 = vmul.f32 %v1104, 0.044715
        %v1112 = vmul.f32 %v1107, 0.044715
        %v1113 = vmul.f32 %v1111, %v1104
        %v1114 = vmul.f32 %v1112, %v1107
        %v1115 = vmul.f32 %v1113, %v1104
        %v1116 = vmul.f32 %v1114, %v1107
        %v1117 = vadd.f32 %v1104, %v1115
        %v1118 = vadd.f32 %v1107, %v1116
        %v1119 = vmul.f32 %v1117, 0.7978846
        %v1120 = vmul.f32 %v1118, 0.7978846
        %v1121 = vtanh.pop %v1119
        %v1122 = vtanh.pop %v1120
        %v1123 = vadd.f32 %v1121, 1.0
        %v1124 = vadd.f32 %v1122, 1.0
        %v1125 = vmul.f32 %v1109, %v1123
        %v1126 = vmul.f32 %v1110, %v1124
        %v1127 = vperm.slane %v644, 7
        %1132 = vrot.lane.b32.xlu0 %v637, 96
        %v1133 = vpop.permute.xlu0 %1132
        %1134 = vrot.lane.b32.xlu0 %v639, 96
        %v1135 = vpop.permute.xlu0 %1134
        %1136 = vrot.lane.b32.xlu0 %v641, 96
        %v1137 = vpop.permute.xlu0 %1136
        %1138 = vrot.lane.b32.xlu0 %v643, 96
        %v1139 = vpop.permute.xlu0 %1138
        %v1145 = vsel %vm418, %v1125, 0
        %v1148 = vsel %vm418, %v1126, 0
        %1150 = vmatpush.msra.mxu0 0.0
        %1151 = vmatpush.msra.mxu0 0.0
        %1152 = vmatpush.msra.mxu0 0.0
        %1153 = vmatpush.msra.mxu0 0.0
        %1154 = vmatpush.msra.mxu0 0.0
        %1155 = vmatpush.msra.mxu0 0.0
        %1156 = vmatpush.msra.mxu0 0.0
        %1157 = vmatpush.msra.mxu0 0.0
        %1158 = vmatpush.msra.mxu0 0.0
        %1159 = vmatpush.msra.mxu0 0.0
        %1160 = vmatpush.msra.mxu0 0.0
        %1161 = vmatpush.msra.mxu0 0.0
        %1162 = vmatpush.msra.mxu0 %v1139
        %1163 = vmatpush.msra.mxu0 %v1137
        %1164 = vmatpush.msra.mxu0 %v1135
        %1165 = vmatpush.msra.mxu0 %v1133
        %1166 = vmatmul.f32.gmra.mxu0 %v1145
        %v1167 = vpop.f32.mrf.mxu0
        %v1168 = vadd.f32 %v1127, %v1167
        %1169 = vmatmul.f32.gmra.mxu0 %v1148
        %v1170 = vpop.f32.mrf.mxu0
        %v1171 = vadd.f32 %v1127, %v1170
        %1172 = vdwg.mxu0
        %v1173 = vadd.f32 %v1077, %v1168
        %v1174 = vadd.f32 %v1078, %v1171
        %v1175 = vsel %vm418, %v1173, 0.0
        %1176 = vadd.xlane.f32.xlu0 %v1175
        %v1177 = vpop.xlane.xlu0 %1176
        %v1178 = vsel %vm1024, %v1174, 0.0
        %1179 = vadd.xlane.f32.xlu0 %v1178
        %v1180 = vpop.xlane.xlu0 %1179
        %v1181 = vmul.f32 %v1177, %v1034
        %v1182 = vmul.f32 %v1180, %v1034
        %v1183 = vsub.f32 %v1173, %v1181
        %v1184 = vsub.f32 %v1174, %v1182
        %v1185 = vmul.f32 %v1183, %v1183
        %v1186 = vmul.f32 %v1184, %v1184
        %v1187 = vsel %vm418, %v1185, 0.0
        %1188 = vadd.xlane.f32.xlu0 %v1187
        %v1189 = vpop.xlane.xlu0 %1188
        %v1190 = vsel %vm1024, %v1186, 0.0
        %1191 = vadd.xlane.f32.xlu0 %v1190
        %v1192 = vpop.xlane.xlu0 %1191
        %v1193 = vmul.f32 %v1189, %v1034
        %v1194 = vmul.f32 %v1192, %v1034
        %v1195 = vadd.f32 %v1193, 1e-05
        %v1196 = vadd.f32 %v1194, 1e-05
        %v1197 = vrsqrt.pop %v1195
        %v1198 = vmul.f32 %v1197, %v1195
        %v1199 = vmul.f32 %v1198, %v1197
        %v1200 = vmul.f32 0.5, %v1199
        %v1201 = vsub.f32 1.5, %v1200
        %v1202 = vmul.f32 %v1197, %v1201
        %vm1203 = vweird.f32 %v1195
        %vm1204 = vweird.f32 %v1197
        %vm1205 = vmor %vm1203, %vm1204
        %v1206 = vsel %vm1205, %v1197, %v1202
        %v1207 = vrsqrt.pop %v1196
        %v1208 = vmul.f32 %v1207, %v1196
        %v1209 = vmul.f32 %v1208, %v1207
        %v1210 = vmul.f32 0.5, %v1209
        %v1211 = vsub.f32 1.5, %v1210
        %v1212 = vmul.f32 %v1207, %v1211
        %vm1213 = vweird.f32 %v1196
        %vm1214 = vweird.f32 %v1207
        %vm1215 = vmor %vm1213, %vm1214
        %v1216 = vsel %vm1215, %v1207, %v1212
        %v1217 = vmul.f32 %v1183, %v1206
        %v1218 = vmul.f32 %v1184, %v1216
        %v1219 = vperm.slane %v645, 0
        %v1220 = vmul.f32 %v1217, %v1219
        %v1221 = vmul.f32 %v1218, %v1219
        %v1222 = vperm.slane %v645, 1
        %v1223 = vadd.f32 %v1220, %v1222
        %v1224 = vadd.f32 %v1221, %v1222
        %s1225 = scalar_lea.vmem %s5, 64
        %v1226 = vld [vmem:[%s1225] sm:$0xff]
        %v1227 = vld [vmem:[%s1225 + $0x8] sm:$0xff]
        %v1228 = vld [vmem:[%s1225 + $0x10] sm:$0xff]
        %v1229 = vld [vmem:[%s1225 + $0x18] sm:$0xff]
        %v1230 = vld [vmem:[%s1225 + $0x20] sm:$0xff]
        %v1231 = vld [vmem:[%s1225 + $0x28] sm:$0xff]
        %v1232 = vld [vmem:[%s1225 + $0x30] sm:$0xff]
        %v1233 = vld [vmem:[%s1225 + $0x38] sm:$0xff]
        %s1234 = scalar_lea.vmem %s6, 16
        %v1235 = vld [vmem:[%s1234] sm:$0xff]
        %v1236 = vld [vmem:[%s1234 + $0x8] sm:$0x3]
        %v1238 = vsel %vm418, %v1223, 0
        %v1241 = vsel %vm418, %v1224, 0
        %1243 = vmatpush.msra.mxu0 0.0
        %1244 = vmatpush.msra.mxu0 0.0
        %1245 = vmatpush.msra.mxu0 0.0
        %1246 = vmatpush.msra.mxu0 0.0
        %1247 = vmatpush.msra.mxu0 0.0
        %1248 = vmatpush.msra.mxu0 0.0
        %1249 = vmatpush.msra.mxu0 0.0
        %1250 = vmatpush.msra.mxu0 0.0
        %1251 = vmatpush.msra.mxu0 0.0
        %1252 = vmatpush.msra.mxu0 0.0
        %1253 = vmatpush.msra.mxu0 0.0
        %1254 = vmatpush.msra.mxu0 0.0
        %1255 = vmatpush.msra.mxu0 %v1232
        %1256 = vmatpush.msra.mxu0 %v1230
        %1257 = vmatpush.msra.mxu0 %v1228
        %1258 = vmatpush.msra.mxu0 %v1226
        %1259 = vmatmul.f32.gmra.mxu0 %v1238
        %v1260 = vpop.f32.mrf.mxu0
        %v1261 = vadd.f32 0.0, %v1260
        %1262 = vmatmul.f32.gmra.mxu0 %v1241
        %v1263 = vpop.f32.mrf.mxu0
        %v1264 = vadd.f32 0.0, %v1263
        %1265 = vdwg.mxu0
        %v1266 = vperm.slane %v1235, 0
        %v1267 = vadd.f32 %v1261, %v1266
        %v1268 = vadd.f32 %v1264, %v1266
        %v1269 = vmul.f32 %v1267, 0.35355338
        %v1270 = vmul.f32 %v1268, 0.35355338
        %v1271 = vperm.slane %v1235, 1
        %1273 = vrot.lane.b32.xlu0 %v1271, 32
        %v1274 = vpop.permute.xlu0 %1273
        %v1276 = vadd.f32 %v1261, %v1274
        %v1277 = vadd.f32 %v1264, %v1274
        %v1278 = vperm.slane %v1235, 2
        %1280 = vrot.lane.b32.xlu0 %v1278, 64
        %v1281 = vpop.permute.xlu0 %1280
        %v1283 = vadd.f32 %v1261, %v1281
        %v1284 = vadd.f32 %v1264, %v1281
        %v1286 = vsel %vm710, %v1270, 0
        %1288 = vmatpush.msra.mxu0 0.0
        %1289 = vmatpush.msra.mxu0 0.0
        %1290 = vmatpush.msra.mxu0 0.0
        %1291 = vmatpush.msra.mxu0 0.0
        %1292 = vmatpush.msra.mxu0 0.0
        %1293 = vmatpush.msra.mxu0 0.0
        %1294 = vmatpush.msra.mxu0 0.0
        %1295 = vmatpush.msra.mxu0 0.0
        %1296 = vmatpush.msra.mxu0 0.0
        %1297 = vmatpush.msra.mxu0 0.0
        %1298 = vmatpush.msra.mxu0 0.0
        %1299 = vmatpush.msra.mxu0 0.0
        %1300 = vmatpush.msra.mxu0 0.0
        %1301 = vmatpush.msra.mxu0 0.0
        %1302 = vmatpush.msra.mxu0 %v1286
        %1303 = vmatpush.msra.mxu0 %v1269
        %1304 = vmatmul.f32.gmra.mxu0 %v696
        %v1305 = vpop.f32.mrf.mxu0
        %v1306 = vadd.f32 0.0, %v1305
        %1307 = vmatmul.f32.gmra.mxu0 %v699
        %v1308 = vpop.f32.mrf.mxu0
        %v1309 = vadd.f32 0.0, %v1308
        %1310 = vmatmul.f32.gmra.mxu0 %v702
        %v1311 = vpop.f32.mrf.mxu0
        %v1312 = vadd.f32 0.0, %v1311
        %1313 = vmatmul.f32.gmra.mxu0 %v705
        %v1314 = vpop.f32.mrf.mxu0
        %v1315 = vadd.f32 0.0, %v1314
        %1316 = vmatmul.f32.gmra.mxu0 %v708
        %v1317 = vpop.f32.mrf.mxu0
        %v1318 = vadd.f32 0.0, %v1317
        %1319 = vdwg.mxu0
        %v1320 = vmul.f32 %v1306, %v510
        %v1321 = vmul.f32 %v1309, %v511
        %v1322 = vmul.f32 %v1312, %v512
        %v1323 = vmul.f32 %v1315, %v513
        %v1324 = vmul.f32 %v1318, %v514
        %1327 = vrot.lane.b32.xlu0 %v1276, 96
        %v1328 = vpop.permute.xlu0 %1327
        %1329 = vrot.lane.b32.xlu0 %v1277, 96
        %v1330 = vpop.permute.xlu0 %1329
        %v1332 = vsel %vm418, %v1320, 0
        %v1335 = vsel %vm418, %v1321, 0
        %v1338 = vsel %vm418, %v1322, 0
        %v1341 = vsel %vm418, %v1323, 0
        %v1344 = vsel %vm418, %v1324, 0
        %v1346 = vsel %vm418, %v1328, 0
        %v1348 = vsel %vm418, %v1330, 0
        %1350 = vmatpush.xpose.msra.mxu0 0.0
        %1351 = vmatpush.xpose.msra.mxu0 0.0
        %1352 = vmatpush.xpose.msra.mxu0 0.0
        %1353 = vmatpush.xpose.msra.mxu0 0.0
        %1354 = vmatpush.xpose.msra.mxu0 0.0
        %1355 = vmatpush.xpose.msra.mxu0 0.0
        %1356 = vmatpush.xpose.msra.mxu0 0.0
        %1357 = vmatpush.xpose.msra.mxu0 0.0
        %1358 = vmatpush.xpose.msra.mxu0 0.0
        %1359 = vmatpush.xpose.msra.mxu0 0.0
        %1360 = vmatpush.xpose.msra.mxu0 0.0
        %1361 = vmatpush.xpose.msra.mxu0 0.0
        %1362 = vmatpush.xpose.msra.mxu0 0.0
        %1363 = vmatpush.xpose.msra.mxu0 0.0
        %1364 = vmatpush.xpose.msra.mxu0 %v1348
        %1365 = vmatpush.xpose.msra.mxu0 %v1346
        %1366 = vmatmul.f32.gmra.mxu0 %v1332
        %v1367 = vpop.f32.mrf.mxu0
        %v1368 = vadd.f32 0.0, %v1367
        %1369 = vmatmul.f32.gmra.mxu0 %v1335
        %v1370 = vpop.f32.mrf.mxu0
        %v1371 = vadd.f32 0.0, %v1370
        %1372 = vmatmul.f32.gmra.mxu0 %v1338
        %v1373 = vpop.f32.mrf.mxu0
        %v1374 = vadd.f32 0.0, %v1373
        %1375 = vmatmul.f32.gmra.mxu0 %v1341
        %v1376 = vpop.f32.mrf.mxu0
        %v1377 = vadd.f32 0.0, %v1376
        %1378 = vmatmul.f32.gmra.mxu0 %v1344
        %v1379 = vpop.f32.mrf.mxu0
        %v1380 = vadd.f32 0.0, %v1379
        %1381 = vdwg.mxu0
        %v1382 = vsel %vm694, %v1368, -inf
        %1383 = vmax.xlane.f32.xlu0 %v1382
        %v1384 = vpop.xlane.xlu0 %1383
        %v1385 = vsel %vm694, %v1371, -inf
        %1386 = vmax.xlane.f32.xlu0 %v1385
        %v1387 = vpop.xlane.xlu0 %1386
        %v1388 = vsel %vm694, %v1374, -inf
        %1389 = vmax.xlane.f32.xlu0 %v1388
        %v1390 = vpop.xlane.xlu0 %1389
        %v1391 = vsel %vm694, %v1377, -inf
        %1392 = vmax.xlane.f32.xlu0 %v1391
        %v1393 = vpop.xlane.xlu0 %1392
        %v1394 = vsel %vm820, %v1380, -inf
        %1395 = vmax.xlane.f32.xlu0 %v1394
        %v1396 = vpop.xlane.xlu0 %1395
        %v1397 = vsub.f32 %v1368, %v1384
        %v1398 = vsub.f32 %v1371, %v1387
        %v1399 = vsub.f32 %v1374, %v1390
        %v1400 = vsub.f32 %v1377, %v1393
        %v1401 = vsub.f32 %v1380, %v1396
        %v1402 = vmul.f32 %v1397, 1.442695
        %v1403 = vpow.pop %v1402
        %v1404 = vmul.f32 %v1398, 1.442695
        %v1405 = vpow.pop %v1404
        %v1406 = vmul.f32 %v1399, 1.442695
        %v1407 = vpow.pop %v1406
        %v1408 = vmul.f32 %v1400, 1.442695
        %v1409 = vpow.pop %v1408
        %v1410 = vmul.f32 %v1401, 1.442695
        %v1411 = vpow.pop %v1410
        %v1412 = vsel %vm694, %v1403, 0.0
        %1413 = vadd.xlane.f32.xlu0 %v1412
        %v1414 = vpop.xlane.xlu0 %1413
        %v1415 = vsel %vm694, %v1405, 0.0
        %1416 = vadd.xlane.f32.xlu0 %v1415
        %v1417 = vpop.xlane.xlu0 %1416
        %v1418 = vsel %vm694, %v1407, 0.0
        %1419 = vadd.xlane.f32.xlu0 %v1418
        %v1420 = vpop.xlane.xlu0 %1419
        %v1421 = vsel %vm694, %v1409, 0.0
        %1422 = vadd.xlane.f32.xlu0 %v1421
        %v1423 = vpop.xlane.xlu0 %1422
        %v1424 = vsel %vm820, %v1411, 0.0
        %1425 = vadd.xlane.f32.xlu0 %v1424
        %v1426 = vpop.xlane.xlu0 %1425
        %v1427 = vrcp.pop %v1414
        %v1428 = vrcp.pop %v1417
        %v1429 = vrcp.pop %v1420
        %v1430 = vrcp.pop %v1423
        %v1431 = vrcp.pop %v1426
        %v1432 = vmul.f32 %v1414, %v1427
        %v1433 = vmul.f32 %v1417, %v1428
        %v1434 = vmul.f32 %v1420, %v1429
        %v1435 = vmul.f32 %v1423, %v1430
        %v1436 = vmul.f32 %v1426, %v1431
        %v1437 = vsub.f32 2.0, %v1432
        %v1438 = vsub.f32 2.0, %v1433
        %v1439 = vsub.f32 2.0, %v1434
        %v1440 = vsub.f32 2.0, %v1435
        %v1441 = vsub.f32 2.0, %v1436
        %v1442 = vmul.f32 %v1427, %v1437
        %v1443 = vmul.f32 %v1428, %v1438
        %v1444 = vmul.f32 %v1429, %v1439
        %v1445 = vmul.f32 %v1430, %v1440
        %v1446 = vmul.f32 %v1431, %v1441
        %v1447 = vmul.f32 %v1403, %v1442
        %v1448 = vmul.f32 %v1405, %v1443
        %v1449 = vmul.f32 %v1407, %v1444
        %v1450 = vmul.f32 %v1409, %v1445
        %v1451 = vmul.f32 %v1411, %v1446
        %1454 = vrot.lane.b32.xlu0 %v1283, 64
        %v1455 = vpop.permute.xlu0 %1454
        %1456 = vrot.lane.b32.xlu0 %v1284, 64
        %v1457 = vpop.permute.xlu0 %1456
        %v1460 = vsel %vm694, %v1447, 0
        %v1463 = vsel %vm694, %v1448, 0
        %v1466 = vsel %vm694, %v1449, 0
        %v1469 = vsel %vm694, %v1450, 0
        %v1472 = vsel %vm694, %v1451, 0
        %v1474 = vsel %vm710, %v1457, 0
        %1476 = vmatpush.msra.mxu0 0.0
        %1477 = vmatpush.msra.mxu0 0.0
        %1478 = vmatpush.msra.mxu0 0.0
        %1479 = vmatpush.msra.mxu0 0.0
        %1480 = vmatpush.msra.mxu0 0.0
        %1481 = vmatpush.msra.mxu0 0.0
        %1482 = vmatpush.msra.mxu0 0.0
        %1483 = vmatpush.msra.mxu0 0.0
        %1484 = vmatpush.msra.mxu0 0.0
        %1485 = vmatpush.msra.mxu0 0.0
        %1486 = vmatpush.msra.mxu0 0.0
        %1487 = vmatpush.msra.mxu0 0.0
        %1488 = vmatpush.msra.mxu0 0.0
        %1489 = vmatpush.msra.mxu0 0.0
        %1490 = vmatpush.msra.mxu0 %v1474
        %1491 = vmatpush.msra.mxu0 %v1455
        %1492 = vmatmul.f32.gmra.mxu0 %v1460
        %v1493 = vpop.f32.mrf.mxu0
        %v1494 = vadd.f32 0.0, %v1493
        %1495 = vmatmul.f32.gmra.mxu0 %v1463
        %v1496 = vpop.f32.mrf.mxu0
        %v1497 = vadd.f32 0.0, %v1496
        %1498 = vmatmul.f32.gmra.mxu0 %v1466
        %v1499 = vpop.f32.mrf.mxu0
        %v1500 = vadd.f32 0.0, %v1499
        %1501 = vmatmul.f32.gmra.mxu0 %v1469
        %v1502 = vpop.f32.mrf.mxu0
        %v1503 = vadd.f32 0.0, %v1502
        %1504 = vmatmul.f32.gmra.mxu0 %v1472
        %v1505 = vpop.f32.mrf.mxu0
        %v1506 = vadd.f32 0.0, %v1505
        %1507 = vdwg.mxu0
        %v1508 = vmul.f32 %v1494, %v510
        %v1509 = vmul.f32 %v1497, %v511
        %v1510 = vmul.f32 %v1500, %v512
        %v1511 = vmul.f32 %v1503, %v513
        %v1512 = vmul.f32 %v1506, %v514
        %v1514 = vsel %vm387, %v1512, 0
        %1516 = vmatpush.msra.mxu0 0.0
        %1517 = vmatpush.msra.mxu0 0.0
        %1518 = vmatpush.msra.mxu0 0.0
        %1519 = vmatpush.msra.mxu0 0.0
        %1520 = vmatpush.msra.mxu0 0.0
        %1521 = vmatpush.msra.mxu0 0.0
        %1522 = vmatpush.msra.mxu0 0.0
        %1523 = vmatpush.msra.mxu0 0.0
        %1524 = vmatpush.msra.mxu0 0.0
        %1525 = vmatpush.msra.mxu0 0.0
        %1526 = vmatpush.msra.mxu0 0.0
        %1527 = vmatpush.msra.mxu0 %v1514
        %1528 = vmatpush.msra.mxu0 %v1511
        %1529 = vmatpush.msra.mxu0 %v1510
        %1530 = vmatpush.msra.mxu0 %v1509
        %1531 = vmatpush.msra.mxu0 %v1508
        %1532 = vmatmul.f32.gmra.mxu0 %v942
        %v1533 = vpop.f32.mrf.mxu0
        %v1534 = vadd.f32 0.0, %v1533
        %1535 = vmatmul.f32.gmra.mxu0 %v945
        %v1536 = vpop.f32.mrf.mxu0
        %v1537 = vadd.f32 0.0, %v1536
        %1538 = vdwg.mxu0
        %v1539 = vperm.slane %v1235, 3
        %1544 = vrot.lane.b32.xlu0 %v1226, 32
        %v1545 = vpop.permute.xlu0 %1544
        %1546 = vrot.lane.b32.xlu0 %v1228, 32
        %v1547 = vpop.permute.xlu0 %1546
        %1548 = vrot.lane.b32.xlu0 %v1230, 32
        %v1549 = vpop.permute.xlu0 %1548
        %1550 = vrot.lane.b32.xlu0 %v1232, 32
        %v1551 = vpop.permute.xlu0 %1550
        %v1557 = vsel %vm418, %v1534, 0
        %v1560 = vsel %vm418, %v1537, 0
        %1562 = vmatpush.msra.mxu0 0.0
        %1563 = vmatpush.msra.mxu0 0.0
        %1564 = vmatpush.msra.mxu0 0.0
        %1565 = vmatpush.msra.mxu0 0.0
        %1566 = vmatpush.msra.mxu0 0.0
        %1567 = vmatpush.msra.mxu0 0.0
        %1568 = vmatpush.msra.mxu0 0.0
        %1569 = vmatpush.msra.mxu0 0.0
        %1570 = vmatpush.msra.mxu0 0.0
        %1571 = vmatpush.msra.mxu0 0.0
        %1572 = vmatpush.msra.mxu0 0.0
        %1573 = vmatpush.msra.mxu0 0.0
        %1574 = vmatpush.msra.mxu0 %v1551
        %1575 = vmatpush.msra.mxu0 %v1549
        %1576 = vmatpush.msra.mxu0 %v1547
        %1577 = vmatpush.msra.mxu0 %v1545
        %1578 = vmatmul.f32.gmra.mxu0 %v1557
        %v1579 = vpop.f32.mrf.mxu0
        %v1580 = vadd.f32 %v1539, %v1579
        %1581 = vmatmul.f32.gmra.mxu0 %v1560
        %v1582 = vpop.f32.mrf.mxu0
        %v1583 = vadd.f32 %v1539, %v1582
        %1584 = vdwg.mxu0
        %v1585 = vadd.f32 %v1223, %v1580
        %v1586 = vadd.f32 %v1224, %v1583
        %v1587 = vsel %vm418, %v1585, 0.0
        %1588 = vadd.xlane.f32.xlu0 %v1587
        %v1589 = vpop.xlane.xlu0 %1588
        %v1590 = vsel %vm1024, %v1586, 0.0
        %1591 = vadd.xlane.f32.xlu0 %v1590
        %v1592 = vpop.xlane.xlu0 %1591
        %v1593 = vmul.f32 %v1589, %v1034
        %v1594 = vmul.f32 %v1592, %v1034
        %v1595 = vsub.f32 %v1585, %v1593
        %v1596 = vsub.f32 %v1586, %v1594
        %v1597 = vmul.f32 %v1595, %v1595
        %v1598 = vmul.f32 %v1596, %v1596
        %v1599 = vsel %vm418, %v1597, 0.0
        %1600 = vadd.xlane.f32.xlu0 %v1599
        %v1601 = vpop.xlane.xlu0 %1600
        %v1602 = vsel %vm1024, %v1598, 0.0
        %1603 = vadd.xlane.f32.xlu0 %v1602
        %v1604 = vpop.xlane.xlu0 %1603
        %v1605 = vmul.f32 %v1601, %v1034
        %v1606 = vmul.f32 %v1604, %v1034
        %v1607 = vadd.f32 %v1605, 1e-05
        %v1608 = vadd.f32 %v1606, 1e-05
        %v1609 = vrsqrt.pop %v1607
        %v1610 = vmul.f32 %v1609, %v1607
        %v1611 = vmul.f32 %v1610, %v1609
        %v1612 = vmul.f32 0.5, %v1611
        %v1613 = vsub.f32 1.5, %v1612
        %v1614 = vmul.f32 %v1609, %v1613
        %vm1615 = vweird.f32 %v1607
        %vm1616 = vweird.f32 %v1609
        %vm1617 = vmor %vm1615, %vm1616
        %v1618 = vsel %vm1617, %v1609, %v1614
        %v1619 = vrsqrt.pop %v1608
        %v1620 = vmul.f32 %v1619, %v1608
        %v1621 = vmul.f32 %v1620, %v1619
        %v1622 = vmul.f32 0.5, %v1621
        %v1623 = vsub.f32 1.5, %v1622
        %v1624 = vmul.f32 %v1619, %v1623
        %vm1625 = vweird.f32 %v1608
        %vm1626 = vweird.f32 %v1619
        %vm1627 = vmor %vm1625, %vm1626
        %v1628 = vsel %vm1627, %v1619, %v1624
        %v1629 = vmul.f32 %v1595, %v1618
        %v1630 = vmul.f32 %v1596, %v1628
        %v1631 = vperm.slane %v1235, 4
        %v1632 = vmul.f32 %v1629, %v1631
        %v1633 = vmul.f32 %v1630, %v1631
        %v1634 = vperm.slane %v1235, 5
        %v1635 = vadd.f32 %v1632, %v1634
        %v1636 = vadd.f32 %v1633, %v1634
        %v1637 = vperm.slane %v1235, 6
        %v1639 = vsel %vm418, %v1635, 0
        %v1642 = vsel %vm418, %v1636, 0
        %1644 = vmatpush.msra.mxu0 0.0
        %1645 = vmatpush.msra.mxu0 0.0
        %1646 = vmatpush.msra.mxu0 0.0
        %1647 = vmatpush.msra.mxu0 0.0
        %1648 = vmatpush.msra.mxu0 0.0
        %1649 = vmatpush.msra.mxu0 0.0
        %1650 = vmatpush.msra.mxu0 0.0
        %1651 = vmatpush.msra.mxu0 0.0
        %1652 = vmatpush.msra.mxu0 0.0
        %1653 = vmatpush.msra.mxu0 0.0
        %1654 = vmatpush.msra.mxu0 0.0
        %1655 = vmatpush.msra.mxu0 0.0
        %1656 = vmatpush.msra.mxu0 %v1233
        %1657 = vmatpush.msra.mxu0 %v1231
        %1658 = vmatpush.msra.mxu0 %v1229
        %1659 = vmatpush.msra.mxu0 %v1227
        %1660 = vmatmul.f32.gmra.mxu0 %v1639
        %v1661 = vpop.f32.mrf.mxu0
        %v1662 = vadd.f32 %v1637, %v1661
        %1663 = vmatmul.f32.gmra.mxu0 %v1642
        %v1664 = vpop.f32.mrf.mxu0
        %v1665 = vadd.f32 %v1637, %v1664
        %1666 = vdwg.mxu0
        %v1667 = vmul.f32 %v1662, 0.5
        %v1668 = vmul.f32 %v1665, 0.5
        %v1669 = vmul.f32 %v1662, 0.044715
        %v1670 = vmul.f32 %v1665, 0.044715
        %v1671 = vmul.f32 %v1669, %v1662
        %v1672 = vmul.f32 %v1670, %v1665
        %v1673 = vmul.f32 %v1671, %v1662
        %v1674 = vmul.f32 %v1672, %v1665
        %v1675 = vadd.f32 %v1662, %v1673
        %v1676 = vadd.f32 %v1665, %v1674
        %v1677 = vmul.f32 %v1675, 0.7978846
        %v1678 = vmul.f32 %v1676, 0.7978846
        %v1679 = vtanh.pop %v1677
        %v1680 = vtanh.pop %v1678
        %v1681 = vadd.f32 %v1679, 1.0
        %v1682 = vadd.f32 %v1680, 1.0
        %v1683 = vmul.f32 %v1667, %v1681
        %v1684 = vmul.f32 %v1668, %v1682
        %v1685 = vperm.slane %v1235, 7
        %1690 = vrot.lane.b32.xlu0 %v1227, 96
        %v1691 = vpop.permute.xlu0 %1690
        %1692 = vrot.lane.b32.xlu0 %v1229, 96
        %v1693 = vpop.permute.xlu0 %1692
        %1694 = vrot.lane.b32.xlu0 %v1231, 96
        %v1695 = vpop.permute.xlu0 %1694
        %1696 = vrot.lane.b32.xlu0 %v1233, 96
        %v1697 = vpop.permute.xlu0 %1696
        %v1703 = vsel %vm418, %v1683, 0
        %v1706 = vsel %vm418, %v1684, 0
        %1708 = vmatpush.msra.mxu0 0.0
        %1709 = vmatpush.msra.mxu0 0.0
        %1710 = vmatpush.msra.mxu0 0.0
        %1711 = vmatpush.msra.mxu0 0.0
        %1712 = vmatpush.msra.mxu0 0.0
        %1713 = vmatpush.msra.mxu0 0.0
        %1714 = vmatpush.msra.mxu0 0.0
        %1715 = vmatpush.msra.mxu0 0.0
        %1716 = vmatpush.msra.mxu0 0.0
        %1717 = vmatpush.msra.mxu0 0.0
        %1718 = vmatpush.msra.mxu0 0.0
        %1719 = vmatpush.msra.mxu0 0.0
        %1720 = vmatpush.msra.mxu0 %v1697
        %1721 = vmatpush.msra.mxu0 %v1695
        %1722 = vmatpush.msra.mxu0 %v1693
        %1723 = vmatpush.msra.mxu0 %v1691
        %1724 = vmatmul.f32.gmra.mxu0 %v1703
        %v1725 = vpop.f32.mrf.mxu0
        %1726 = vmatmul.f32.gmra.mxu0 %v1706
        %v1727 = vpop.f32.mrf.mxu0
        %v1728 = vadd.f32 %v1685, %v1727
        %1729 = vdwg.mxu0
        %v1730 = vadd.f32 %v1636, %v1728
        %v1731 = vsel %vm1024, %v1730, 0.0
        %1732 = vadd.xlane.f32.xlu0 %v1731
        %v1733 = vpop.xlane.xlu0 %1732
        %v1734 = vmul.f32 %v1733, %v1034
        %v1735 = vsub.f32 %v1730, %v1734
        %v1736 = vmul.f32 %v1735, %v1735
        %v1737 = vsel %vm1024, %v1736, 0.0
        %1738 = vadd.xlane.f32.xlu0 %v1737
        %v1739 = vpop.xlane.xlu0 %1738
        %v1740 = vmul.f32 %v1739, %v1034
        %v1741 = vadd.f32 %v1740, 1e-05
        %v1742 = vrsqrt.pop %v1741
        %v1743 = vmul.f32 %v1742, %v1741
        %v1744 = vmul.f32 %v1743, %v1742
        %v1745 = vmul.f32 0.5, %v1744
        %v1746 = vsub.f32 1.5, %v1745
        %v1747 = vmul.f32 %v1742, %v1746
        %vm1748 = vweird.f32 %v1741
        %vm1749 = vweird.f32 %v1742
        %vm1750 = vmor %vm1748, %vm1749
        %v1751 = vsel %vm1750, %v1742, %v1747
        %v1752 = vmul.f32 %v1735, %v1751
        %v1753 = vperm.slane %v1236, 0
        %v1754 = vmul.f32 %v1752, %v1753
        %v1755 = vperm.slane %v1236, 1
        %v1756 = vadd.f32 %v1754, %v1755
        %v1757 = vld [vmem:[%s8] sm:$0x1]
        %v1758 = vld [vmem:[%s8 + $0x1] sm:$0x1]
        %v1759 = vsel %vm1024, %v1756, 0.0
        %1760 = vadd.xlane.f32.xlu0 %v1759
        %v1761 = vpop.xlane.xlu0 %1760
        %v1762 = vmul.f32 %v1761, %v1034
        %v1763 = vsub.f32 %v1756, %v1762
        %v1764 = vmul.f32 %v1763, %v1763
        %v1765 = vsel %vm1024, %v1764, 0.0
        %1766 = vadd.xlane.f32.xlu0 %v1765
        %v1767 = vpop.xlane.xlu0 %1766
        %v1768 = vmul.f32 %v1767, %v1034
        %v1769 = vadd.f32 %v1768, 1e-05
        %v1770 = vrsqrt.pop %v1769
        %v1771 = vmul.f32 %v1770, %v1769
        %v1772 = vmul.f32 %v1771, %v1770
        %v1773 = vmul.f32 0.5, %v1772
        %v1774 = vsub.f32 1.5, %v1773
        %v1775 = vmul.f32 %v1770, %v1774
        %vm1776 = vweird.f32 %v1769
        %vm1777 = vweird.f32 %v1770
        %vm1778 = vmor %vm1776, %vm1777
        %v1779 = vsel %vm1778, %v1770, %v1775
        %v1780 = vmul.f32 %v1763, %v1779
        %v1781 = vmul.f32 %v1780, %v1757
        %v1782 = vadd.f32 %v1781, %v1758
        %v1783 = vld [vmem:[#allocation5] sm:$0xff]
        %v1784 = vld [vmem:[#allocation5 + $0x8] sm:$0xff]
        %v1785 = vld [vmem:[#allocation5 + $0x10] sm:$0xff]
        %v1786 = vld [vmem:[#allocation5 + $0x18] sm:$0xff]
        %v1787 = vld [vmem:[%s8 + $0x2] sm:$0x1]
        %v1789 = vsel %vm418, %v1782, 0
        %1791 = vmatpush.msra.mxu0 0.0
        %1792 = vmatpush.msra.mxu0 0.0
        %1793 = vmatpush.msra.mxu0 0.0
        %1794 = vmatpush.msra.mxu0 0.0
        %1795 = vmatpush.msra.mxu0 0.0
        %1796 = vmatpush.msra.mxu0 0.0
        %1797 = vmatpush.msra.mxu0 0.0
        %1798 = vmatpush.msra.mxu0 0.0
        %1799 = vmatpush.msra.mxu0 0.0
        %1800 = vmatpush.msra.mxu0 0.0
        %1801 = vmatpush.msra.mxu0 0.0
        %1802 = vmatpush.msra.mxu0 0.0
        %1803 = vmatpush.msra.mxu0 %v1786
        %1804 = vmatpush.msra.mxu0 %v1785
        %1805 = vmatpush.msra.mxu0 %v1784
        %1806 = vmatpush.msra.mxu0 %v1783
        %1807 = vmatmul.f32.gmra.mxu0 %v1789
        %v1808 = vpop.f32.mrf.mxu0
        %v1809 = vadd.f32 %v1787, %v1808
        %1810 = vdwg.mxu0
        %1811 = vst.msk [vmem:[%s356] sm:$0x1] %vm1024, %v1809
        %s1812 = sand.u32 %s227, 1
        %s1813 = scalar_lea.sflag [#allocation4], %s1812
        %s1814 = sand.u32 %s227, 1
        %s1815 = scalar_lea.vmem [#allocation7], %s1814
        // Predicated region
        $region65: #{tpu_custom_call.1} parent=55 // pred_check
          %p1816 = pneg %p237
        $region66: #{tpu_custom_call.1} parent=55 // pred_check_branch
          %1818 = sbr.rel (%p1816) target = $region68
        $region67: #{tpu_custom_call.1} parent=55 // pred_region
          %1820 = vsyncadd %s1813, 0
          %s1821 = scalar_lea.hbm %s9, %s25
          %s1823 = sshll.u32 %s1815, 4
          %s1824 = int_to_ptr.vmem [resolvable:$true] %s1823
          %s1825 = sshll.u32 %s1821, 4
          %s1826 = int_to_ptr.hbm [resolvable:$true] %s1825
          %1828 = dma.vmem_to_hbm [thread:$0]  %s1824, 16, %s1826, %s1813
        $region68: #{tpu_custom_call.1} parent=55 // pred_fallthru
          _
      $region56: #{tpu_custom_call.1} parent=5 // pred_fallthru
        _
      %p1829 = scmp.le.s32.totalorder 2, %s20
      // Predicated region
      $region69: #{tpu_custom_call.1} parent=5 // pred_check
        %p1830 = pneg %p1829
      $region70: #{tpu_custom_call.1} parent=5 // pred_check_branch
        %1832 = sbr.rel (%p1830) target = $region72
      $region71: #{tpu_custom_call.1} parent=5 // pred_region
        %s1833 = ssub.s32 %s20, 2
        // Predicated region
        $region73: #{tpu_custom_call.1} parent=71 // pred_check
          %p1834 = pneg %p243
        $region74: #{tpu_custom_call.1} parent=71 // pred_check_branch
          %1836 = sbr.rel (%p1834) target = $region76
        $region75: #{tpu_custom_call.1} parent=71 // pred_region
          %s1837 = sand.u32 %s228, 1
          %s1838 = scalar_lea.sflag [#allocation4], %s1837
          %s1839 = sand.u32 %s228, 1
          %s1840 = scalar_lea.vmem [#allocation7], %s1839
          %1842 = dma.done %s1838, 16
        $region76: #{tpu_custom_call.1} parent=71 // pred_fallthru
          _
      $region72: #{tpu_custom_call.1} parent=5 // pred_fallthru
        _
    $region6: #{tpu_custom_call.1} parent=1 // loop_footer
      %s24 = sadd.s32 1, %s20
    $region7: #{tpu_custom_call.1} parent=1 // loop_footer_branch
      %19 = sbr.rel target = $region3
    $region8: #{tpu_custom_call.1} parent=1 // loop_exit
      _
    %1843 = vsyncpa [#allocation3], 1
    %s1844 = scalar_lea.sflag [#allocation3], 1
    %1845 = vsyncpa %s1844, 1
    %1846 = vsyncpa [#allocation6], 1
    %1847 = vsyncpa [#allocation4], 1
    %s1848 = scalar_lea.sflag [#allocation4], 1
    %1849 = vsyncpa %s1848, 1

</llo_original>
